<compile_context>
chip_gen: v5e
topology: v5e:2x2
jax: 0.10.0
libtpu: 0.0.40
codegen_flags: <defaults>
</compile_context>

<pallas_src>
import functools

import jax
import jax.numpy as jnp
from jax.experimental import pallas as pl
from jax.experimental.pallas import tpu as pltpu

K = 7          # conv kernel size
PAD = (K - 1) // 2


def spatial_gate_kernel(w_ref, x_ref, o_ref, *, C, H, W, c_chunk):
    """One block of batch rows per grid step.

    w_ref : SMEM (2*K*K + 1,) f32   -- BN-folded conv weights + folded bias
    x_ref : VMEM (BN, C, H*W)       -- input block (spatial dims flattened)
    o_ref : VMEM (BN, C, H*W)       -- output block
    """
    HW = H * W
    BN = x_ref.shape[0]
    hr = PAD * W                    # row halo (whole rows) for the conv domain
    hx = hr + PAD                   # full halo (rows + columns)
    HWe = HW + 2 * hr               # row-halo-extended flattened length
    n_chunks = C // c_chunk         # c_chunk divides C (chosen by the wrapper)

    # ---- Pass 1: ChannelPool, streamed over C (no full f32 copy of x) -------
    # max stays in the input dtype (exact); the sum accumulates in f32.
    # Static chunk loop == fully-unrolled fori_loop; each chunk dies after its
    # max/sum, so live ranges stay ~1 chunk + 2 accumulators.  (For very large
    # C a lax.fori_loop with partial unroll would bound code size.)
    xc = x_ref[:, 0:c_chunk, :]                       # (BN, cc, HW)
    cmax = jnp.max(xc, axis=1)
    csum = jnp.sum(xc.astype(jnp.float32), axis=1)
    for ci in range(1, n_chunks):
        c0 = ci * c_chunk
        xc = x_ref[:, c0:c0 + c_chunk, :]
        cmax = jnp.maximum(cmax, jnp.max(xc, axis=1))
        csum = csum + jnp.sum(xc.astype(jnp.float32), axis=1)
    cmaxf = cmax.astype(jnp.float32)                  # (BN, HW)
    cmean = csum * (1.0 / C)                          # (BN, HW)

    # ---- per-dx column masks for the W boundary (leading dim 1, as floats) --
    col = jax.lax.broadcasted_iota(jnp.int32, (1, HWe), 1) % W
    maskf = {}
    for kx in range(K):
        dx = kx - PAD
        if dx != 0:                                   # dx == 0 is always valid
            cd = col + dx
            maskf[kx] = ((cd >= 0) & (cd < W)).astype(jnp.float32)

    # ---- 2-in / 1-out 7x7 "same" conv on register values --------------------
    # Per channel: build the 7 column-masked dx-shifted planes ONCE on the
    # row-halo-extended domain (7 unaligned lane shifts), accumulate all 49
    # weight taps as plain VALU FMAs into 7 per-ky row accumulators, then one
    # dy*W shift per ky.  21 unaligned XLU shifts total instead of 98.
    zhalo = jnp.zeros((BN, hx), jnp.float32)
    rows = [None] * K                                 # (BN, HWe) accumulators
    for c, plane in enumerate((cmaxf, cmean)):        # channel 0 = max, 1 = mean
        fpad = jnp.concatenate([zhalo, plane, zhalo], axis=1)   # (BN, HW+2*hx)
        for kx in range(K):
            dx = kx - PAD
            pdx = fpad[:, PAD + dx:PAD + dx + HWe]    # (BN, HWe)
            if dx != 0:
                pdx = pdx * maskf[kx]
            for ky in range(K):
                tap = w_ref[c * K * K + ky * K + kx] * pdx
                rows[ky] = tap if rows[ky] is None else rows[ky] + tap
    acc = jnp.zeros((BN, HW), jnp.float32)
    for ky in range(K):
        s = ky * W                                    # = hr + (ky - PAD) * W
        acc = acc + rows[ky][:, s:s + HW]
    acc = acc + w_ref[2 * K * K]                      # folded BatchNorm bias

    # ---- sigmoid gate --------------------------------------------------------
    # Exact sigmoid (matches the f32 reference at 1e-5); swap the divide for
    # pl.reciprocal(..., approx=True) on the EUP if a looser tolerance is OK.
    scale = 1.0 / (1.0 + jnp.exp(-acc))               # (BN, HW) f32
    scale_m = scale.astype(jnp.bfloat16) if x_ref.dtype == jnp.bfloat16 else scale

    # ---- Pass 2: gate multiply + store, streamed over C ----------------------
    for ci in range(n_chunks):
        c0 = ci * c_chunk
        xc = x_ref[:, c0:c0 + c_chunk, :]             # (BN, cc, HW)
        o_ref[:, c0:c0 + c_chunk, :] = (xc * scale_m[:, None, :]).astype(o_ref.dtype)


def _pick_c_chunk(c):
    """Largest divisor of C that fits in one 8-sublane group."""
    for cc in range(min(c, 8), 0, -1):
        if c % cc == 0:
            return cc
    return 1


def _pick_block_n(n, eff_bytes_per_batch, target_bytes=2 << 20, max_block=256):
    """Batch rows per grid step: ~target_bytes of per-step working set, but at
    least 2 grid steps (v7x megacore sharding + DMA double-buffering)."""
    bn = max(1, min(n, max_block, target_bytes // max(eff_bytes_per_batch, 1)))
    if n >= 2:
        bn = min(bn, n // 2)
    return int(max(1, bn))


def spatial_gate(x, conv_w, bn_gamma, bn_beta, bn_mean, bn_var, eps=1e-5):
    """x: (N, C, H, W); conv_w: (1, 2, 7, 7); BN params: (1,) each."""
    N, C, H, W = x.shape
    HW = H * W
    HWe = HW + 2 * PAD * W

    # Fold eval-mode BatchNorm into conv weights / bias (glue, not hot path).
    bn_scale = bn_gamma / jnp.sqrt(bn_var + eps)              # (1,)
    w_folded = conv_w[0] * bn_scale[0]                        # (2, 7, 7)
    b_folded = bn_beta - bn_mean * bn_scale                   # (1,)
    w_flat = jnp.concatenate(
        [w_folded.reshape(-1), b_folded.reshape(1)]).astype(jnp.float32)  # (99,)

    # Metadata-only reshape so H*W sits on the 128-lane axis.
    x_flat = x.reshape(N, C, HW)

    # Tile sizing: input-tile bytes plus f32 conv temporaries per batch row
    # (7 row accumulators + fpad + shifted plane + pooled maps/acc/scale).
    in_bytes_per_batch = C * HW * x.dtype.itemsize
    conv_bytes_per_batch = 12 * HWe * 4
    bn_blk = _pick_block_n(N, in_bytes_per_batch + conv_bytes_per_batch)
    n_steps = pl.cdiv(N, bn_blk)                # no divisibility requirement
    c_chunk = _pick_c_chunk(C)

    # VMEM budget: double-buffered in+out tiles plus the conv temporaries.
    tile_bytes = bn_blk * in_bytes_per_batch
    est = 4 * tile_bytes + bn_blk * conv_bytes_per_batch + (2 << 20)
    vmem_limit = int(min(64 << 20, max(32 << 20, est)))

    kernel = functools.partial(
        spatial_gate_kernel, C=C, H=H, W=W, c_chunk=c_chunk)

    out = pl.pallas_call(
        kernel,
        out_shape=jax.ShapeDtypeStruct((N, C, HW), x.dtype),
        grid_spec=pltpu.PrefetchScalarGridSpec(
            num_scalar_prefetch=0,
            grid=(n_steps,),
            in_specs=[
                pl.BlockSpec(memory_space=pltpu.MemorySpace.SMEM),   # weights
                pl.BlockSpec((bn_blk, C, HW), lambda b: (b, 0, 0)),  # x
            ],
            out_specs=pl.BlockSpec((bn_blk, C, HW), lambda b: (b, 0, 0)),
        ),
        compiler_params=pltpu.CompilerParams(
            dimension_semantics=("parallel",),
            vmem_limit_bytes=vmem_limit,
        ),
    )(w_flat, x_flat)
    return out.reshape(N, C, H, W)


# ---------------------------- pure-JAX reference -----------------------------
def spatial_gate_ref(x, conv_w, bn_gamma, bn_beta, bn_mean, bn_var, eps=1e-5):
    cmax = jnp.max(x, axis=1, keepdims=True)
    cmean = jnp.mean(x, axis=1, keepdims=True)
    xc = jnp.concatenate([cmax, cmean], axis=1)               # (N, 2, H, W)
    y = jax.lax.conv_general_dilated(
        xc, conv_w, window_strides=(1, 1), padding=[(PAD, PAD), (PAD, PAD)],
        dimension_numbers=("NCHW", "OIHW", "NCHW"))
    y = (y - bn_mean.reshape(1, -1, 1, 1)) / jnp.sqrt(
        bn_var.reshape(1, -1, 1, 1) + eps)
    y = y * bn_gamma.reshape(1, -1, 1, 1) + bn_beta.reshape(1, -1, 1, 1)
    return x * jax.nn.sigmoid(y)


if __name__ == "__main__":
    key = jax.random.PRNGKey(0)
    k_x1, k_x2, k_w = jax.random.split(key, 3)

    # Deterministic params (Conv2d(2,1,7,7,bias=False) + BatchNorm2d(1), eval).
    conv_w = 0.1 * jax.random.normal(k_w, (1, 2, K, K), dtype=jnp.float32)
    bn_gamma = jnp.array([0.9], jnp.float32)
    bn_beta = jnp.array([0.1], jnp.float32)
    bn_mean = jnp.array([0.05], jnp.float32)
    bn_var = jnp.array([1.2], jnp.float32)

    # Case 1: small canonical shape.
    N, C, H, W = 2, 4, 16, 16
    x = jax.random.normal(k_x1, (N, C, H, W), dtype=jnp.float32)
    out = jax.block_until_ready(
        spatial_gate(x, conv_w, bn_gamma, bn_beta, bn_mean, bn_var))
    ref = spatial_gate_ref(x, conv_w, bn_gamma, bn_beta, bn_mean, bn_var)
    assert out.shape == (N, C, H, W) and out.dtype == jnp.float32
    assert jnp.allclose(out, ref, atol=1e-5, rtol=1e-5), "mismatch vs reference"

    # Case 2: N not divisible by the batch block (exercises the cdiv grid /
    # masked boundary block and the multi-row block path).
    N2 = 5
    x2 = jax.random.normal(k_x2, (N2, C, H, W), dtype=jnp.float32)
    out2 = jax.block_until_ready(
        spatial_gate(x2, conv_w, bn_gamma, bn_beta, bn_mean, bn_var))
    ref2 = spatial_gate_ref(x2, conv_w, bn_gamma, bn_beta, bn_mean, bn_var)
    assert jnp.allclose(out2, ref2, atol=1e-5, rtol=1e-5), "mismatch (ragged N)"

    print("KERNEL_OK")
</pallas_src>

<mosaic_0001>
module attributes {stable_mosaic.version = 11 : i64} {
  func.func @spatial_gate_kernel(%arg0: i32, %arg1: memref<99xf32, #tpu.memory_space<smem>>, %arg2: memref<1x4x256xf32, #tpu.memory_space<vmem>>, %arg3: memref<1x4x256xf32, #tpu.memory_space<vmem>>) attributes {dimension_semantics = [#tpu.dimension_semantics<parallel>], iteration_bounds = array<i64: 2>, scalar_prefetch = 0 : i64, scratch_operands = 0 : i64, tpu.core_type = #tpu.core_type<tc>, window_params = [{transform_indices = @transform_0, window_bounds = array<i64: 99>}, {transform_indices = @transform_1, window_bounds = array<i64: 1, 4, 256>}, {transform_indices = @transform_2, window_bounds = array<i64: 1, 4, 256>}]} {
    %c0 = arith.constant 0 : index
    %c0_0 = arith.constant 0 : index
    %c0_1 = arith.constant 0 : index
    %0 = vector.load %arg2[%c0, %c0_0, %c0_1] : memref<1x4x256xf32, #tpu.memory_space<vmem>>, vector<1x4x256xf32>
    %cst = arith.constant dense<0xFF800000> : vector<1x256xf32>
    %1 = vector.multi_reduction <maximumf>, %0, %cst [1] : vector<1x4x256xf32> to vector<1x256xf32>
    %cst_2 = arith.constant dense<0.000000e+00> : vector<1x256xf32>
    %2 = vector.multi_reduction <add>, %0, %cst_2 [1] : vector<1x4x256xf32> to vector<1x256xf32>
    %cst_3 = arith.constant 2.500000e-01 : f32
    %3 = vector.broadcast %cst_3 : f32 to vector<1x256xf32>
    %4 = arith.mulf %2, %3 : vector<1x256xf32>
    %5 = tpu.iota {dimensions = array<i32: 1>} : vector<1x352xi32>
    %c16_i32 = arith.constant 16 : i32
    %c0_i32 = arith.constant 0 : i32
    %6 = arith.cmpi eq, %c16_i32, %c0_i32 : i32
    %c1_i32 = arith.constant 1 : i32
    %7 = arith.select %6, %c1_i32, %c16_i32 : i32
    %8 = vector.broadcast %7 : i32 to vector<1x352xi32>
    %9 = arith.remsi %5, %8 : vector<1x352xi32>
    %c0_i32_4 = arith.constant 0 : i32
    %10 = vector.broadcast %c0_i32_4 : i32 to vector<1x352xi32>
    %11 = arith.cmpi ne, %9, %10 : vector<1x352xi32>
    %c0_i32_5 = arith.constant 0 : i32
    %12 = vector.broadcast %c0_i32_5 : i32 to vector<1x352xi32>
    %13 = arith.cmpi slt, %9, %12 : vector<1x352xi32>
    %c0_i32_6 = arith.constant 0 : i32
    %14 = arith.cmpi slt, %7, %c0_i32_6 : i32
    %15 = vector.broadcast %14 : i1 to vector<1x352xi1>
    %16 = vector.broadcast %15 : vector<1x352xi1> to vector<1x352xi1>
    %17 = arith.xori %13, %16 : vector<1x352xi1>
    %18 = arith.andi %17, %11 : vector<1x352xi1>
    %19 = vector.broadcast %7 : i32 to vector<1x352xi32>
    %20 = arith.addi %9, %19 : vector<1x352xi32>
    %21 = arith.select %18, %20, %9 : vector<1x352xi1>, vector<1x352xi32>
    %c-3_i32 = arith.constant -3 : i32
    %22 = vector.broadcast %c-3_i32 : i32 to vector<1x352xi32>
    %23 = arith.addi %21, %22 : vector<1x352xi32>
    %c0_i32_7 = arith.constant 0 : i32
    %24 = vector.broadcast %c0_i32_7 : i32 to vector<1x352xi32>
    %25 = arith.cmpi sge, %23, %24 : vector<1x352xi32>
    %c16_i32_8 = arith.constant 16 : i32
    %26 = vector.broadcast %c16_i32_8 : i32 to vector<1x352xi32>
    %27 = arith.cmpi slt, %23, %26 : vector<1x352xi32>
    %28 = arith.andi %25, %27 : vector<1x352xi1>
    %29 = arith.extui %28 : vector<1x352xi1> to vector<1x352xi32>
    %30 = arith.sitofp %29 : vector<1x352xi32> to vector<1x352xf32>
    %c-2_i32 = arith.constant -2 : i32
    %31 = vector.broadcast %c-2_i32 : i32 to vector<1x352xi32>
    %32 = arith.addi %21, %31 : vector<1x352xi32>
    %c0_i32_9 = arith.constant 0 : i32
    %33 = vector.broadcast %c0_i32_9 : i32 to vector<1x352xi32>
    %34 = arith.cmpi sge, %32, %33 : vector<1x352xi32>
    %c16_i32_10 = arith.constant 16 : i32
    %35 = vector.broadcast %c16_i32_10 : i32 to vector<1x352xi32>
    %36 = arith.cmpi slt, %32, %35 : vector<1x352xi32>
    %37 = arith.andi %34, %36 : vector<1x352xi1>
    %38 = arith.extui %37 : vector<1x352xi1> to vector<1x352xi32>
    %39 = arith.sitofp %38 : vector<1x352xi32> to vector<1x352xf32>
    %c-1_i32 = arith.constant -1 : i32
    %40 = vector.broadcast %c-1_i32 : i32 to vector<1x352xi32>
    %41 = arith.addi %21, %40 : vector<1x352xi32>
    %c0_i32_11 = arith.constant 0 : i32
    %42 = vector.broadcast %c0_i32_11 : i32 to vector<1x352xi32>
    %43 = arith.cmpi sge, %41, %42 : vector<1x352xi32>
    %c16_i32_12 = arith.constant 16 : i32
    %44 = vector.broadcast %c16_i32_12 : i32 to vector<1x352xi32>
    %45 = arith.cmpi slt, %41, %44 : vector<1x352xi32>
    %46 = arith.andi %43, %45 : vector<1x352xi1>
    %47 = arith.extui %46 : vector<1x352xi1> to vector<1x352xi32>
    %48 = arith.sitofp %47 : vector<1x352xi32> to vector<1x352xf32>
    %c1_i32_13 = arith.constant 1 : i32
    %49 = vector.broadcast %c1_i32_13 : i32 to vector<1x352xi32>
    %50 = arith.addi %21, %49 : vector<1x352xi32>
    %c0_i32_14 = arith.constant 0 : i32
    %51 = vector.broadcast %c0_i32_14 : i32 to vector<1x352xi32>
    %52 = arith.cmpi sge, %50, %51 : vector<1x352xi32>
    %c16_i32_15 = arith.constant 16 : i32
    %53 = vector.broadcast %c16_i32_15 : i32 to vector<1x352xi32>
    %54 = arith.cmpi slt, %50, %53 : vector<1x352xi32>
    %55 = arith.andi %52, %54 : vector<1x352xi1>
    %56 = arith.extui %55 : vector<1x352xi1> to vector<1x352xi32>
    %57 = arith.sitofp %56 : vector<1x352xi32> to vector<1x352xf32>
    %c2_i32 = arith.constant 2 : i32
    %58 = vector.broadcast %c2_i32 : i32 to vector<1x352xi32>
    %59 = arith.addi %21, %58 : vector<1x352xi32>
    %c0_i32_16 = arith.constant 0 : i32
    %60 = vector.broadcast %c0_i32_16 : i32 to vector<1x352xi32>
    %61 = arith.cmpi sge, %59, %60 : vector<1x352xi32>
    %c16_i32_17 = arith.constant 16 : i32
    %62 = vector.broadcast %c16_i32_17 : i32 to vector<1x352xi32>
    %63 = arith.cmpi slt, %59, %62 : vector<1x352xi32>
    %64 = arith.andi %61, %63 : vector<1x352xi1>
    %65 = arith.extui %64 : vector<1x352xi1> to vector<1x352xi32>
    %66 = arith.sitofp %65 : vector<1x352xi32> to vector<1x352xf32>
    %c3_i32 = arith.constant 3 : i32
    %67 = vector.broadcast %c3_i32 : i32 to vector<1x352xi32>
    %68 = arith.addi %21, %67 : vector<1x352xi32>
    %c0_i32_18 = arith.constant 0 : i32
    %69 = vector.broadcast %c0_i32_18 : i32 to vector<1x352xi32>
    %70 = arith.cmpi sge, %68, %69 : vector<1x352xi32>
    %c16_i32_19 = arith.constant 16 : i32
    %71 = vector.broadcast %c16_i32_19 : i32 to vector<1x352xi32>
    %72 = arith.cmpi slt, %68, %71 : vector<1x352xi32>
    %73 = arith.andi %70, %72 : vector<1x352xi1>
    %74 = arith.extui %73 : vector<1x352xi1> to vector<1x352xi32>
    %75 = arith.sitofp %74 : vector<1x352xi32> to vector<1x352xf32>
    %cst_20 = arith.constant 0.000000e+00 : f32
    %76 = vector.broadcast %cst_20 : f32 to vector<1x51xf32>
    %77 = tpu.concatenate %76, %1, %76 in 1 : vector<1x51xf32>, vector<1x256xf32>, vector<1x51xf32> -> vector<1x358xf32>
    %78 = vector.extract_strided_slice %77 {offsets = [0, 0], sizes = [1, 352], strides = [1, 1]} : vector<1x358xf32> to vector<1x352xf32>
    %79 = arith.mulf %78, %30 : vector<1x352xf32>
    %c0_21 = arith.constant 0 : index
    %80 = memref.load %arg1[%c0_21] : memref<99xf32, #tpu.memory_space<smem>>
    %81 = vector.broadcast %80 : f32 to vector<1x352xf32>
    %82 = arith.mulf %81, %79 : vector<1x352xf32>
    %c7 = arith.constant 7 : index
    %83 = memref.load %arg1[%c7] : memref<99xf32, #tpu.memory_space<smem>>
    %84 = vector.broadcast %83 : f32 to vector<1x352xf32>
    %85 = arith.mulf %84, %79 : vector<1x352xf32>
    %c14 = arith.constant 14 : index
    %86 = memref.load %arg1[%c14] : memref<99xf32, #tpu.memory_space<smem>>
    %87 = vector.broadcast %86 : f32 to vector<1x352xf32>
    %88 = arith.mulf %87, %79 : vector<1x352xf32>
    %c21 = arith.constant 21 : index
    %89 = memref.load %arg1[%c21] : memref<99xf32, #tpu.memory_space<smem>>
    %90 = vector.broadcast %89 : f32 to vector<1x352xf32>
    %91 = arith.mulf %90, %79 : vector<1x352xf32>
    %c28 = arith.constant 28 : index
    %92 = memref.load %arg1[%c28] : memref<99xf32, #tpu.memory_space<smem>>
    %93 = vector.broadcast %92 : f32 to vector<1x352xf32>
    %94 = arith.mulf %93, %79 : vector<1x352xf32>
    %c35 = arith.constant 35 : index
    %95 = memref.load %arg1[%c35] : memref<99xf32, #tpu.memory_space<smem>>
    %96 = vector.broadcast %95 : f32 to vector<1x352xf32>
    %97 = arith.mulf %96, %79 : vector<1x352xf32>
    %c42 = arith.constant 42 : index
    %98 = memref.load %arg1[%c42] : memref<99xf32, #tpu.memory_space<smem>>
    %99 = vector.broadcast %98 : f32 to vector<1x352xf32>
    %100 = arith.mulf %99, %79 : vector<1x352xf32>
    %101 = vector.extract_strided_slice %77 {offsets = [0, 1], sizes = [1, 352], strides = [1, 1]} : vector<1x358xf32> to vector<1x352xf32>
    %102 = arith.mulf %101, %39 : vector<1x352xf32>
    %c1 = arith.constant 1 : index
    %103 = memref.load %arg1[%c1] : memref<99xf32, #tpu.memory_space<smem>>
    %104 = vector.broadcast %103 : f32 to vector<1x352xf32>
    %105 = arith.mulf %104, %102 : vector<1x352xf32>
    %106 = arith.addf %82, %105 : vector<1x352xf32>
    %c8 = arith.constant 8 : index
    %107 = memref.load %arg1[%c8] : memref<99xf32, #tpu.memory_space<smem>>
    %108 = vector.broadcast %107 : f32 to vector<1x352xf32>
    %109 = arith.mulf %108, %102 : vector<1x352xf32>
    %110 = arith.addf %85, %109 : vector<1x352xf32>
    %c15 = arith.constant 15 : index
    %111 = memref.load %arg1[%c15] : memref<99xf32, #tpu.memory_space<smem>>
    %112 = vector.broadcast %111 : f32 to vector<1x352xf32>
    %113 = arith.mulf %112, %102 : vector<1x352xf32>
    %114 = arith.addf %88, %113 : vector<1x352xf32>
    %c22 = arith.constant 22 : index
    %115 = memref.load %arg1[%c22] : memref<99xf32, #tpu.memory_space<smem>>
    %116 = vector.broadcast %115 : f32 to vector<1x352xf32>
    %117 = arith.mulf %116, %102 : vector<1x352xf32>
    %118 = arith.addf %91, %117 : vector<1x352xf32>
    %c29 = arith.constant 29 : index
    %119 = memref.load %arg1[%c29] : memref<99xf32, #tpu.memory_space<smem>>
    %120 = vector.broadcast %119 : f32 to vector<1x352xf32>
    %121 = arith.mulf %120, %102 : vector<1x352xf32>
    %122 = arith.addf %94, %121 : vector<1x352xf32>
    %c36 = arith.constant 36 : index
    %123 = memref.load %arg1[%c36] : memref<99xf32, #tpu.memory_space<smem>>
    %124 = vector.broadcast %123 : f32 to vector<1x352xf32>
    %125 = arith.mulf %124, %102 : vector<1x352xf32>
    %126 = arith.addf %97, %125 : vector<1x352xf32>
    %c43 = arith.constant 43 : index
    %127 = memref.load %arg1[%c43] : memref<99xf32, #tpu.memory_space<smem>>
    %128 = vector.broadcast %127 : f32 to vector<1x352xf32>
    %129 = arith.mulf %128, %102 : vector<1x352xf32>
    %130 = arith.addf %100, %129 : vector<1x352xf32>
    %131 = vector.extract_strided_slice %77 {offsets = [0, 2], sizes = [1, 352], strides = [1, 1]} : vector<1x358xf32> to vector<1x352xf32>
    %132 = arith.mulf %131, %48 : vector<1x352xf32>
    %c2 = arith.constant 2 : index
    %133 = memref.load %arg1[%c2] : memref<99xf32, #tpu.memory_space<smem>>
    %134 = vector.broadcast %133 : f32 to vector<1x352xf32>
    %135 = arith.mulf %134, %132 : vector<1x352xf32>
    %136 = arith.addf %106, %135 : vector<1x352xf32>
    %c9 = arith.constant 9 : index
    %137 = memref.load %arg1[%c9] : memref<99xf32, #tpu.memory_space<smem>>
    %138 = vector.broadcast %137 : f32 to vector<1x352xf32>
    %139 = arith.mulf %138, %132 : vector<1x352xf32>
    %140 = arith.addf %110, %139 : vector<1x352xf32>
    %c16 = arith.constant 16 : index
    %141 = memref.load %arg1[%c16] : memref<99xf32, #tpu.memory_space<smem>>
    %142 = vector.broadcast %141 : f32 to vector<1x352xf32>
    %143 = arith.mulf %142, %132 : vector<1x352xf32>
    %144 = arith.addf %114, %143 : vector<1x352xf32>
    %c23 = arith.constant 23 : index
    %145 = memref.load %arg1[%c23] : memref<99xf32, #tpu.memory_space<smem>>
    %146 = vector.broadcast %145 : f32 to vector<1x352xf32>
    %147 = arith.mulf %146, %132 : vector<1x352xf32>
    %148 = arith.addf %118, %147 : vector<1x352xf32>
    %c30 = arith.constant 30 : index
    %149 = memref.load %arg1[%c30] : memref<99xf32, #tpu.memory_space<smem>>
    %150 = vector.broadcast %149 : f32 to vector<1x352xf32>
    %151 = arith.mulf %150, %132 : vector<1x352xf32>
    %152 = arith.addf %122, %151 : vector<1x352xf32>
    %c37 = arith.constant 37 : index
    %153 = memref.load %arg1[%c37] : memref<99xf32, #tpu.memory_space<smem>>
    %154 = vector.broadcast %153 : f32 to vector<1x352xf32>
    %155 = arith.mulf %154, %132 : vector<1x352xf32>
    %156 = arith.addf %126, %155 : vector<1x352xf32>
    %c44 = arith.constant 44 : index
    %157 = memref.load %arg1[%c44] : memref<99xf32, #tpu.memory_space<smem>>
    %158 = vector.broadcast %157 : f32 to vector<1x352xf32>
    %159 = arith.mulf %158, %132 : vector<1x352xf32>
    %160 = arith.addf %130, %159 : vector<1x352xf32>
    %161 = vector.extract_strided_slice %77 {offsets = [0, 3], sizes = [1, 352], strides = [1, 1]} : vector<1x358xf32> to vector<1x352xf32>
    %c3 = arith.constant 3 : index
    %162 = memref.load %arg1[%c3] : memref<99xf32, #tpu.memory_space<smem>>
    %163 = vector.broadcast %162 : f32 to vector<1x352xf32>
    %164 = arith.mulf %163, %161 : vector<1x352xf32>
    %165 = arith.addf %136, %164 : vector<1x352xf32>
    %c10 = arith.constant 10 : index
    %166 = memref.load %arg1[%c10] : memref<99xf32, #tpu.memory_space<smem>>
    %167 = vector.broadcast %166 : f32 to vector<1x352xf32>
    %168 = arith.mulf %167, %161 : vector<1x352xf32>
    %169 = arith.addf %140, %168 : vector<1x352xf32>
    %c17 = arith.constant 17 : index
    %170 = memref.load %arg1[%c17] : memref<99xf32, #tpu.memory_space<smem>>
    %171 = vector.broadcast %170 : f32 to vector<1x352xf32>
    %172 = arith.mulf %171, %161 : vector<1x352xf32>
    %173 = arith.addf %144, %172 : vector<1x352xf32>
    %c24 = arith.constant 24 : index
    %174 = memref.load %arg1[%c24] : memref<99xf32, #tpu.memory_space<smem>>
    %175 = vector.broadcast %174 : f32 to vector<1x352xf32>
    %176 = arith.mulf %175, %161 : vector<1x352xf32>
    %177 = arith.addf %148, %176 : vector<1x352xf32>
    %c31 = arith.constant 31 : index
    %178 = memref.load %arg1[%c31] : memref<99xf32, #tpu.memory_space<smem>>
    %179 = vector.broadcast %178 : f32 to vector<1x352xf32>
    %180 = arith.mulf %179, %161 : vector<1x352xf32>
    %181 = arith.addf %152, %180 : vector<1x352xf32>
    %c38 = arith.constant 38 : index
    %182 = memref.load %arg1[%c38] : memref<99xf32, #tpu.memory_space<smem>>
    %183 = vector.broadcast %182 : f32 to vector<1x352xf32>
    %184 = arith.mulf %183, %161 : vector<1x352xf32>
    %185 = arith.addf %156, %184 : vector<1x352xf32>
    %c45 = arith.constant 45 : index
    %186 = memref.load %arg1[%c45] : memref<99xf32, #tpu.memory_space<smem>>
    %187 = vector.broadcast %186 : f32 to vector<1x352xf32>
    %188 = arith.mulf %187, %161 : vector<1x352xf32>
    %189 = arith.addf %160, %188 : vector<1x352xf32>
    %190 = vector.extract_strided_slice %77 {offsets = [0, 4], sizes = [1, 352], strides = [1, 1]} : vector<1x358xf32> to vector<1x352xf32>
    %191 = arith.mulf %190, %57 : vector<1x352xf32>
    %c4 = arith.constant 4 : index
    %192 = memref.load %arg1[%c4] : memref<99xf32, #tpu.memory_space<smem>>
    %193 = vector.broadcast %192 : f32 to vector<1x352xf32>
    %194 = arith.mulf %193, %191 : vector<1x352xf32>
    %195 = arith.addf %165, %194 : vector<1x352xf32>
    %c11 = arith.constant 11 : index
    %196 = memref.load %arg1[%c11] : memref<99xf32, #tpu.memory_space<smem>>
    %197 = vector.broadcast %196 : f32 to vector<1x352xf32>
    %198 = arith.mulf %197, %191 : vector<1x352xf32>
    %199 = arith.addf %169, %198 : vector<1x352xf32>
    %c18 = arith.constant 18 : index
    %200 = memref.load %arg1[%c18] : memref<99xf32, #tpu.memory_space<smem>>
    %201 = vector.broadcast %200 : f32 to vector<1x352xf32>
    %202 = arith.mulf %201, %191 : vector<1x352xf32>
    %203 = arith.addf %173, %202 : vector<1x352xf32>
    %c25 = arith.constant 25 : index
    %204 = memref.load %arg1[%c25] : memref<99xf32, #tpu.memory_space<smem>>
    %205 = vector.broadcast %204 : f32 to vector<1x352xf32>
    %206 = arith.mulf %205, %191 : vector<1x352xf32>
    %207 = arith.addf %177, %206 : vector<1x352xf32>
    %c32 = arith.constant 32 : index
    %208 = memref.load %arg1[%c32] : memref<99xf32, #tpu.memory_space<smem>>
    %209 = vector.broadcast %208 : f32 to vector<1x352xf32>
    %210 = arith.mulf %209, %191 : vector<1x352xf32>
    %211 = arith.addf %181, %210 : vector<1x352xf32>
    %c39 = arith.constant 39 : index
    %212 = memref.load %arg1[%c39] : memref<99xf32, #tpu.memory_space<smem>>
    %213 = vector.broadcast %212 : f32 to vector<1x352xf32>
    %214 = arith.mulf %213, %191 : vector<1x352xf32>
    %215 = arith.addf %185, %214 : vector<1x352xf32>
    %c46 = arith.constant 46 : index
    %216 = memref.load %arg1[%c46] : memref<99xf32, #tpu.memory_space<smem>>
    %217 = vector.broadcast %216 : f32 to vector<1x352xf32>
    %218 = arith.mulf %217, %191 : vector<1x352xf32>
    %219 = arith.addf %189, %218 : vector<1x352xf32>
    %220 = vector.extract_strided_slice %77 {offsets = [0, 5], sizes = [1, 352], strides = [1, 1]} : vector<1x358xf32> to vector<1x352xf32>
    %221 = arith.mulf %220, %66 : vector<1x352xf32>
    %c5 = arith.constant 5 : index
    %222 = memref.load %arg1[%c5] : memref<99xf32, #tpu.memory_space<smem>>
    %223 = vector.broadcast %222 : f32 to vector<1x352xf32>
    %224 = arith.mulf %223, %221 : vector<1x352xf32>
    %225 = arith.addf %195, %224 : vector<1x352xf32>
    %c12 = arith.constant 12 : index
    %226 = memref.load %arg1[%c12] : memref<99xf32, #tpu.memory_space<smem>>
    %227 = vector.broadcast %226 : f32 to vector<1x352xf32>
    %228 = arith.mulf %227, %221 : vector<1x352xf32>
    %229 = arith.addf %199, %228 : vector<1x352xf32>
    %c19 = arith.constant 19 : index
    %230 = memref.load %arg1[%c19] : memref<99xf32, #tpu.memory_space<smem>>
    %231 = vector.broadcast %230 : f32 to vector<1x352xf32>
    %232 = arith.mulf %231, %221 : vector<1x352xf32>
    %233 = arith.addf %203, %232 : vector<1x352xf32>
    %c26 = arith.constant 26 : index
    %234 = memref.load %arg1[%c26] : memref<99xf32, #tpu.memory_space<smem>>
    %235 = vector.broadcast %234 : f32 to vector<1x352xf32>
    %236 = arith.mulf %235, %221 : vector<1x352xf32>
    %237 = arith.addf %207, %236 : vector<1x352xf32>
    %c33 = arith.constant 33 : index
    %238 = memref.load %arg1[%c33] : memref<99xf32, #tpu.memory_space<smem>>
    %239 = vector.broadcast %238 : f32 to vector<1x352xf32>
    %240 = arith.mulf %239, %221 : vector<1x352xf32>
    %241 = arith.addf %211, %240 : vector<1x352xf32>
    %c40 = arith.constant 40 : index
    %242 = memref.load %arg1[%c40] : memref<99xf32, #tpu.memory_space<smem>>
    %243 = vector.broadcast %242 : f32 to vector<1x352xf32>
    %244 = arith.mulf %243, %221 : vector<1x352xf32>
    %245 = arith.addf %215, %244 : vector<1x352xf32>
    %c47 = arith.constant 47 : index
    %246 = memref.load %arg1[%c47] : memref<99xf32, #tpu.memory_space<smem>>
    %247 = vector.broadcast %246 : f32 to vector<1x352xf32>
    %248 = arith.mulf %247, %221 : vector<1x352xf32>
    %249 = arith.addf %219, %248 : vector<1x352xf32>
    %250 = vector.extract_strided_slice %77 {offsets = [0, 6], sizes = [1, 352], strides = [1, 1]} : vector<1x358xf32> to vector<1x352xf32>
    %251 = arith.mulf %250, %75 : vector<1x352xf32>
    %c6 = arith.constant 6 : index
    %252 = memref.load %arg1[%c6] : memref<99xf32, #tpu.memory_space<smem>>
    %253 = vector.broadcast %252 : f32 to vector<1x352xf32>
    %254 = arith.mulf %253, %251 : vector<1x352xf32>
    %255 = arith.addf %225, %254 : vector<1x352xf32>
    %c13 = arith.constant 13 : index
    %256 = memref.load %arg1[%c13] : memref<99xf32, #tpu.memory_space<smem>>
    %257 = vector.broadcast %256 : f32 to vector<1x352xf32>
    %258 = arith.mulf %257, %251 : vector<1x352xf32>
    %259 = arith.addf %229, %258 : vector<1x352xf32>
    %c20 = arith.constant 20 : index
    %260 = memref.load %arg1[%c20] : memref<99xf32, #tpu.memory_space<smem>>
    %261 = vector.broadcast %260 : f32 to vector<1x352xf32>
    %262 = arith.mulf %261, %251 : vector<1x352xf32>
    %263 = arith.addf %233, %262 : vector<1x352xf32>
    %c27 = arith.constant 27 : index
    %264 = memref.load %arg1[%c27] : memref<99xf32, #tpu.memory_space<smem>>
    %265 = vector.broadcast %264 : f32 to vector<1x352xf32>
    %266 = arith.mulf %265, %251 : vector<1x352xf32>
    %267 = arith.addf %237, %266 : vector<1x352xf32>
    %c34 = arith.constant 34 : index
    %268 = memref.load %arg1[%c34] : memref<99xf32, #tpu.memory_space<smem>>
    %269 = vector.broadcast %268 : f32 to vector<1x352xf32>
    %270 = arith.mulf %269, %251 : vector<1x352xf32>
    %271 = arith.addf %241, %270 : vector<1x352xf32>
    %c41 = arith.constant 41 : index
    %272 = memref.load %arg1[%c41] : memref<99xf32, #tpu.memory_space<smem>>
    %273 = vector.broadcast %272 : f32 to vector<1x352xf32>
    %274 = arith.mulf %273, %251 : vector<1x352xf32>
    %275 = arith.addf %245, %274 : vector<1x352xf32>
    %c48 = arith.constant 48 : index
    %276 = memref.load %arg1[%c48] : memref<99xf32, #tpu.memory_space<smem>>
    %277 = vector.broadcast %276 : f32 to vector<1x352xf32>
    %278 = arith.mulf %277, %251 : vector<1x352xf32>
    %279 = arith.addf %249, %278 : vector<1x352xf32>
    %280 = tpu.concatenate %76, %4, %76 in 1 : vector<1x51xf32>, vector<1x256xf32>, vector<1x51xf32> -> vector<1x358xf32>
    %281 = vector.extract_strided_slice %280 {offsets = [0, 0], sizes = [1, 352], strides = [1, 1]} : vector<1x358xf32> to vector<1x352xf32>
    %282 = arith.mulf %281, %30 : vector<1x352xf32>
    %c49 = arith.constant 49 : index
    %283 = memref.load %arg1[%c49] : memref<99xf32, #tpu.memory_space<smem>>
    %284 = vector.broadcast %283 : f32 to vector<1x352xf32>
    %285 = arith.mulf %284, %282 : vector<1x352xf32>
    %286 = arith.addf %255, %285 : vector<1x352xf32>
    %c56 = arith.constant 56 : index
    %287 = memref.load %arg1[%c56] : memref<99xf32, #tpu.memory_space<smem>>
    %288 = vector.broadcast %287 : f32 to vector<1x352xf32>
    %289 = arith.mulf %288, %282 : vector<1x352xf32>
    %290 = arith.addf %259, %289 : vector<1x352xf32>
    %c63 = arith.constant 63 : index
    %291 = memref.load %arg1[%c63] : memref<99xf32, #tpu.memory_space<smem>>
    %292 = vector.broadcast %291 : f32 to vector<1x352xf32>
    %293 = arith.mulf %292, %282 : vector<1x352xf32>
    %294 = arith.addf %263, %293 : vector<1x352xf32>
    %c70 = arith.constant 70 : index
    %295 = memref.load %arg1[%c70] : memref<99xf32, #tpu.memory_space<smem>>
    %296 = vector.broadcast %295 : f32 to vector<1x352xf32>
    %297 = arith.mulf %296, %282 : vector<1x352xf32>
    %298 = arith.addf %267, %297 : vector<1x352xf32>
    %c77 = arith.constant 77 : index
    %299 = memref.load %arg1[%c77] : memref<99xf32, #tpu.memory_space<smem>>
    %300 = vector.broadcast %299 : f32 to vector<1x352xf32>
    %301 = arith.mulf %300, %282 : vector<1x352xf32>
    %302 = arith.addf %271, %301 : vector<1x352xf32>
    %c84 = arith.constant 84 : index
    %303 = memref.load %arg1[%c84] : memref<99xf32, #tpu.memory_space<smem>>
    %304 = vector.broadcast %303 : f32 to vector<1x352xf32>
    %305 = arith.mulf %304, %282 : vector<1x352xf32>
    %306 = arith.addf %275, %305 : vector<1x352xf32>
    %c91 = arith.constant 91 : index
    %307 = memref.load %arg1[%c91] : memref<99xf32, #tpu.memory_space<smem>>
    %308 = vector.broadcast %307 : f32 to vector<1x352xf32>
    %309 = arith.mulf %308, %282 : vector<1x352xf32>
    %310 = arith.addf %279, %309 : vector<1x352xf32>
    %311 = vector.extract_strided_slice %280 {offsets = [0, 1], sizes = [1, 352], strides = [1, 1]} : vector<1x358xf32> to vector<1x352xf32>
    %312 = arith.mulf %311, %39 : vector<1x352xf32>
    %c50 = arith.constant 50 : index
    %313 = memref.load %arg1[%c50] : memref<99xf32, #tpu.memory_space<smem>>
    %314 = vector.broadcast %313 : f32 to vector<1x352xf32>
    %315 = arith.mulf %314, %312 : vector<1x352xf32>
    %316 = arith.addf %286, %315 : vector<1x352xf32>
    %c57 = arith.constant 57 : index
    %317 = memref.load %arg1[%c57] : memref<99xf32, #tpu.memory_space<smem>>
    %318 = vector.broadcast %317 : f32 to vector<1x352xf32>
    %319 = arith.mulf %318, %312 : vector<1x352xf32>
    %320 = arith.addf %290, %319 : vector<1x352xf32>
    %c64 = arith.constant 64 : index
    %321 = memref.load %arg1[%c64] : memref<99xf32, #tpu.memory_space<smem>>
    %322 = vector.broadcast %321 : f32 to vector<1x352xf32>
    %323 = arith.mulf %322, %312 : vector<1x352xf32>
    %324 = arith.addf %294, %323 : vector<1x352xf32>
    %c71 = arith.constant 71 : index
    %325 = memref.load %arg1[%c71] : memref<99xf32, #tpu.memory_space<smem>>
    %326 = vector.broadcast %325 : f32 to vector<1x352xf32>
    %327 = arith.mulf %326, %312 : vector<1x352xf32>
    %328 = arith.addf %298, %327 : vector<1x352xf32>
    %c78 = arith.constant 78 : index
    %329 = memref.load %arg1[%c78] : memref<99xf32, #tpu.memory_space<smem>>
    %330 = vector.broadcast %329 : f32 to vector<1x352xf32>
    %331 = arith.mulf %330, %312 : vector<1x352xf32>
    %332 = arith.addf %302, %331 : vector<1x352xf32>
    %c85 = arith.constant 85 : index
    %333 = memref.load %arg1[%c85] : memref<99xf32, #tpu.memory_space<smem>>
    %334 = vector.broadcast %333 : f32 to vector<1x352xf32>
    %335 = arith.mulf %334, %312 : vector<1x352xf32>
    %336 = arith.addf %306, %335 : vector<1x352xf32>
    %c92 = arith.constant 92 : index
    %337 = memref.load %arg1[%c92] : memref<99xf32, #tpu.memory_space<smem>>
    %338 = vector.broadcast %337 : f32 to vector<1x352xf32>
    %339 = arith.mulf %338, %312 : vector<1x352xf32>
    %340 = arith.addf %310, %339 : vector<1x352xf32>
    %341 = vector.extract_strided_slice %280 {offsets = [0, 2], sizes = [1, 352], strides = [1, 1]} : vector<1x358xf32> to vector<1x352xf32>
    %342 = arith.mulf %341, %48 : vector<1x352xf32>
    %c51 = arith.constant 51 : index
    %343 = memref.load %arg1[%c51] : memref<99xf32, #tpu.memory_space<smem>>
    %344 = vector.broadcast %343 : f32 to vector<1x352xf32>
    %345 = arith.mulf %344, %342 : vector<1x352xf32>
    %346 = arith.addf %316, %345 : vector<1x352xf32>
    %c58 = arith.constant 58 : index
    %347 = memref.load %arg1[%c58] : memref<99xf32, #tpu.memory_space<smem>>
    %348 = vector.broadcast %347 : f32 to vector<1x352xf32>
    %349 = arith.mulf %348, %342 : vector<1x352xf32>
    %350 = arith.addf %320, %349 : vector<1x352xf32>
    %c65 = arith.constant 65 : index
    %351 = memref.load %arg1[%c65] : memref<99xf32, #tpu.memory_space<smem>>
    %352 = vector.broadcast %351 : f32 to vector<1x352xf32>
    %353 = arith.mulf %352, %342 : vector<1x352xf32>
    %354 = arith.addf %324, %353 : vector<1x352xf32>
    %c72 = arith.constant 72 : index
    %355 = memref.load %arg1[%c72] : memref<99xf32, #tpu.memory_space<smem>>
    %356 = vector.broadcast %355 : f32 to vector<1x352xf32>
    %357 = arith.mulf %356, %342 : vector<1x352xf32>
    %358 = arith.addf %328, %357 : vector<1x352xf32>
    %c79 = arith.constant 79 : index
    %359 = memref.load %arg1[%c79] : memref<99xf32, #tpu.memory_space<smem>>
    %360 = vector.broadcast %359 : f32 to vector<1x352xf32>
    %361 = arith.mulf %360, %342 : vector<1x352xf32>
    %362 = arith.addf %332, %361 : vector<1x352xf32>
    %c86 = arith.constant 86 : index
    %363 = memref.load %arg1[%c86] : memref<99xf32, #tpu.memory_space<smem>>
    %364 = vector.broadcast %363 : f32 to vector<1x352xf32>
    %365 = arith.mulf %364, %342 : vector<1x352xf32>
    %366 = arith.addf %336, %365 : vector<1x352xf32>
    %c93 = arith.constant 93 : index
    %367 = memref.load %arg1[%c93] : memref<99xf32, #tpu.memory_space<smem>>
    %368 = vector.broadcast %367 : f32 to vector<1x352xf32>
    %369 = arith.mulf %368, %342 : vector<1x352xf32>
    %370 = arith.addf %340, %369 : vector<1x352xf32>
    %371 = vector.extract_strided_slice %280 {offsets = [0, 3], sizes = [1, 352], strides = [1, 1]} : vector<1x358xf32> to vector<1x352xf32>
    %c52 = arith.constant 52 : index
    %372 = memref.load %arg1[%c52] : memref<99xf32, #tpu.memory_space<smem>>
    %373 = vector.broadcast %372 : f32 to vector<1x352xf32>
    %374 = arith.mulf %373, %371 : vector<1x352xf32>
    %375 = arith.addf %346, %374 : vector<1x352xf32>
    %c59 = arith.constant 59 : index
    %376 = memref.load %arg1[%c59] : memref<99xf32, #tpu.memory_space<smem>>
    %377 = vector.broadcast %376 : f32 to vector<1x352xf32>
    %378 = arith.mulf %377, %371 : vector<1x352xf32>
    %379 = arith.addf %350, %378 : vector<1x352xf32>
    %c66 = arith.constant 66 : index
    %380 = memref.load %arg1[%c66] : memref<99xf32, #tpu.memory_space<smem>>
    %381 = vector.broadcast %380 : f32 to vector<1x352xf32>
    %382 = arith.mulf %381, %371 : vector<1x352xf32>
    %383 = arith.addf %354, %382 : vector<1x352xf32>
    %c73 = arith.constant 73 : index
    %384 = memref.load %arg1[%c73] : memref<99xf32, #tpu.memory_space<smem>>
    %385 = vector.broadcast %384 : f32 to vector<1x352xf32>
    %386 = arith.mulf %385, %371 : vector<1x352xf32>
    %387 = arith.addf %358, %386 : vector<1x352xf32>
    %c80 = arith.constant 80 : index
    %388 = memref.load %arg1[%c80] : memref<99xf32, #tpu.memory_space<smem>>
    %389 = vector.broadcast %388 : f32 to vector<1x352xf32>
    %390 = arith.mulf %389, %371 : vector<1x352xf32>
    %391 = arith.addf %362, %390 : vector<1x352xf32>
    %c87 = arith.constant 87 : index
    %392 = memref.load %arg1[%c87] : memref<99xf32, #tpu.memory_space<smem>>
    %393 = vector.broadcast %392 : f32 to vector<1x352xf32>
    %394 = arith.mulf %393, %371 : vector<1x352xf32>
    %395 = arith.addf %366, %394 : vector<1x352xf32>
    %c94 = arith.constant 94 : index
    %396 = memref.load %arg1[%c94] : memref<99xf32, #tpu.memory_space<smem>>
    %397 = vector.broadcast %396 : f32 to vector<1x352xf32>
    %398 = arith.mulf %397, %371 : vector<1x352xf32>
    %399 = arith.addf %370, %398 : vector<1x352xf32>
    %400 = vector.extract_strided_slice %280 {offsets = [0, 4], sizes = [1, 352], strides = [1, 1]} : vector<1x358xf32> to vector<1x352xf32>
    %401 = arith.mulf %400, %57 : vector<1x352xf32>
    %c53 = arith.constant 53 : index
    %402 = memref.load %arg1[%c53] : memref<99xf32, #tpu.memory_space<smem>>
    %403 = vector.broadcast %402 : f32 to vector<1x352xf32>
    %404 = arith.mulf %403, %401 : vector<1x352xf32>
    %405 = arith.addf %375, %404 : vector<1x352xf32>
    %c60 = arith.constant 60 : index
    %406 = memref.load %arg1[%c60] : memref<99xf32, #tpu.memory_space<smem>>
    %407 = vector.broadcast %406 : f32 to vector<1x352xf32>
    %408 = arith.mulf %407, %401 : vector<1x352xf32>
    %409 = arith.addf %379, %408 : vector<1x352xf32>
    %c67 = arith.constant 67 : index
    %410 = memref.load %arg1[%c67] : memref<99xf32, #tpu.memory_space<smem>>
    %411 = vector.broadcast %410 : f32 to vector<1x352xf32>
    %412 = arith.mulf %411, %401 : vector<1x352xf32>
    %413 = arith.addf %383, %412 : vector<1x352xf32>
    %c74 = arith.constant 74 : index
    %414 = memref.load %arg1[%c74] : memref<99xf32, #tpu.memory_space<smem>>
    %415 = vector.broadcast %414 : f32 to vector<1x352xf32>
    %416 = arith.mulf %415, %401 : vector<1x352xf32>
    %417 = arith.addf %387, %416 : vector<1x352xf32>
    %c81 = arith.constant 81 : index
    %418 = memref.load %arg1[%c81] : memref<99xf32, #tpu.memory_space<smem>>
    %419 = vector.broadcast %418 : f32 to vector<1x352xf32>
    %420 = arith.mulf %419, %401 : vector<1x352xf32>
    %421 = arith.addf %391, %420 : vector<1x352xf32>
    %c88 = arith.constant 88 : index
    %422 = memref.load %arg1[%c88] : memref<99xf32, #tpu.memory_space<smem>>
    %423 = vector.broadcast %422 : f32 to vector<1x352xf32>
    %424 = arith.mulf %423, %401 : vector<1x352xf32>
    %425 = arith.addf %395, %424 : vector<1x352xf32>
    %c95 = arith.constant 95 : index
    %426 = memref.load %arg1[%c95] : memref<99xf32, #tpu.memory_space<smem>>
    %427 = vector.broadcast %426 : f32 to vector<1x352xf32>
    %428 = arith.mulf %427, %401 : vector<1x352xf32>
    %429 = arith.addf %399, %428 : vector<1x352xf32>
    %430 = vector.extract_strided_slice %280 {offsets = [0, 5], sizes = [1, 352], strides = [1, 1]} : vector<1x358xf32> to vector<1x352xf32>
    %431 = arith.mulf %430, %66 : vector<1x352xf32>
    %c54 = arith.constant 54 : index
    %432 = memref.load %arg1[%c54] : memref<99xf32, #tpu.memory_space<smem>>
    %433 = vector.broadcast %432 : f32 to vector<1x352xf32>
    %434 = arith.mulf %433, %431 : vector<1x352xf32>
    %435 = arith.addf %405, %434 : vector<1x352xf32>
    %c61 = arith.constant 61 : index
    %436 = memref.load %arg1[%c61] : memref<99xf32, #tpu.memory_space<smem>>
    %437 = vector.broadcast %436 : f32 to vector<1x352xf32>
    %438 = arith.mulf %437, %431 : vector<1x352xf32>
    %439 = arith.addf %409, %438 : vector<1x352xf32>
    %c68 = arith.constant 68 : index
    %440 = memref.load %arg1[%c68] : memref<99xf32, #tpu.memory_space<smem>>
    %441 = vector.broadcast %440 : f32 to vector<1x352xf32>
    %442 = arith.mulf %441, %431 : vector<1x352xf32>
    %443 = arith.addf %413, %442 : vector<1x352xf32>
    %c75 = arith.constant 75 : index
    %444 = memref.load %arg1[%c75] : memref<99xf32, #tpu.memory_space<smem>>
    %445 = vector.broadcast %444 : f32 to vector<1x352xf32>
    %446 = arith.mulf %445, %431 : vector<1x352xf32>
    %447 = arith.addf %417, %446 : vector<1x352xf32>
    %c82 = arith.constant 82 : index
    %448 = memref.load %arg1[%c82] : memref<99xf32, #tpu.memory_space<smem>>
    %449 = vector.broadcast %448 : f32 to vector<1x352xf32>
    %450 = arith.mulf %449, %431 : vector<1x352xf32>
    %451 = arith.addf %421, %450 : vector<1x352xf32>
    %c89 = arith.constant 89 : index
    %452 = memref.load %arg1[%c89] : memref<99xf32, #tpu.memory_space<smem>>
    %453 = vector.broadcast %452 : f32 to vector<1x352xf32>
    %454 = arith.mulf %453, %431 : vector<1x352xf32>
    %455 = arith.addf %425, %454 : vector<1x352xf32>
    %c96 = arith.constant 96 : index
    %456 = memref.load %arg1[%c96] : memref<99xf32, #tpu.memory_space<smem>>
    %457 = vector.broadcast %456 : f32 to vector<1x352xf32>
    %458 = arith.mulf %457, %431 : vector<1x352xf32>
    %459 = arith.addf %429, %458 : vector<1x352xf32>
    %460 = vector.extract_strided_slice %280 {offsets = [0, 6], sizes = [1, 352], strides = [1, 1]} : vector<1x358xf32> to vector<1x352xf32>
    %461 = arith.mulf %460, %75 : vector<1x352xf32>
    %c55 = arith.constant 55 : index
    %462 = memref.load %arg1[%c55] : memref<99xf32, #tpu.memory_space<smem>>
    %463 = vector.broadcast %462 : f32 to vector<1x352xf32>
    %464 = arith.mulf %463, %461 : vector<1x352xf32>
    %465 = arith.addf %435, %464 : vector<1x352xf32>
    %c62 = arith.constant 62 : index
    %466 = memref.load %arg1[%c62] : memref<99xf32, #tpu.memory_space<smem>>
    %467 = vector.broadcast %466 : f32 to vector<1x352xf32>
    %468 = arith.mulf %467, %461 : vector<1x352xf32>
    %469 = arith.addf %439, %468 : vector<1x352xf32>
    %c69 = arith.constant 69 : index
    %470 = memref.load %arg1[%c69] : memref<99xf32, #tpu.memory_space<smem>>
    %471 = vector.broadcast %470 : f32 to vector<1x352xf32>
    %472 = arith.mulf %471, %461 : vector<1x352xf32>
    %473 = arith.addf %443, %472 : vector<1x352xf32>
    %c76 = arith.constant 76 : index
    %474 = memref.load %arg1[%c76] : memref<99xf32, #tpu.memory_space<smem>>
    %475 = vector.broadcast %474 : f32 to vector<1x352xf32>
    %476 = arith.mulf %475, %461 : vector<1x352xf32>
    %477 = arith.addf %447, %476 : vector<1x352xf32>
    %c83 = arith.constant 83 : index
    %478 = memref.load %arg1[%c83] : memref<99xf32, #tpu.memory_space<smem>>
    %479 = vector.broadcast %478 : f32 to vector<1x352xf32>
    %480 = arith.mulf %479, %461 : vector<1x352xf32>
    %481 = arith.addf %451, %480 : vector<1x352xf32>
    %c90 = arith.constant 90 : index
    %482 = memref.load %arg1[%c90] : memref<99xf32, #tpu.memory_space<smem>>
    %483 = vector.broadcast %482 : f32 to vector<1x352xf32>
    %484 = arith.mulf %483, %461 : vector<1x352xf32>
    %485 = arith.addf %455, %484 : vector<1x352xf32>
    %c97 = arith.constant 97 : index
    %486 = memref.load %arg1[%c97] : memref<99xf32, #tpu.memory_space<smem>>
    %487 = vector.broadcast %486 : f32 to vector<1x352xf32>
    %488 = arith.mulf %487, %461 : vector<1x352xf32>
    %489 = arith.addf %459, %488 : vector<1x352xf32>
    %cst_22 = arith.constant 0.000000e+00 : f32
    %490 = vector.broadcast %cst_22 : f32 to vector<1x256xf32>
    %491 = vector.extract_strided_slice %465 {offsets = [0, 0], sizes = [1, 256], strides = [1, 1]} : vector<1x352xf32> to vector<1x256xf32>
    %492 = arith.addf %490, %491 : vector<1x256xf32>
    %493 = vector.extract_strided_slice %469 {offsets = [0, 16], sizes = [1, 256], strides = [1, 1]} : vector<1x352xf32> to vector<1x256xf32>
    %494 = arith.addf %492, %493 : vector<1x256xf32>
    %495 = vector.extract_strided_slice %473 {offsets = [0, 32], sizes = [1, 256], strides = [1, 1]} : vector<1x352xf32> to vector<1x256xf32>
    %496 = arith.addf %494, %495 : vector<1x256xf32>
    %497 = vector.extract_strided_slice %477 {offsets = [0, 48], sizes = [1, 256], strides = [1, 1]} : vector<1x352xf32> to vector<1x256xf32>
    %498 = arith.addf %496, %497 : vector<1x256xf32>
    %499 = vector.extract_strided_slice %481 {offsets = [0, 64], sizes = [1, 256], strides = [1, 1]} : vector<1x352xf32> to vector<1x256xf32>
    %500 = arith.addf %498, %499 : vector<1x256xf32>
    %501 = vector.extract_strided_slice %485 {offsets = [0, 80], sizes = [1, 256], strides = [1, 1]} : vector<1x352xf32> to vector<1x256xf32>
    %502 = arith.addf %500, %501 : vector<1x256xf32>
    %503 = vector.extract_strided_slice %489 {offsets = [0, 96], sizes = [1, 256], strides = [1, 1]} : vector<1x352xf32> to vector<1x256xf32>
    %504 = arith.addf %502, %503 : vector<1x256xf32>
    %c98 = arith.constant 98 : index
    %505 = memref.load %arg1[%c98] : memref<99xf32, #tpu.memory_space<smem>>
    %506 = vector.broadcast %505 : f32 to vector<1x256xf32>
    %507 = arith.addf %504, %506 : vector<1x256xf32>
    %cst_23 = arith.constant 0.000000e+00 : f32
    %508 = vector.broadcast %cst_23 : f32 to vector<1x256xf32>
    %509 = arith.subf %508, %507 : vector<1x256xf32>
    %510 = math.exp %509 : vector<1x256xf32>
    %cst_24 = arith.constant 1.000000e+00 : f32
    %511 = vector.broadcast %cst_24 : f32 to vector<1x256xf32>
    %512 = arith.addf %511, %510 : vector<1x256xf32>
    %cst_25 = arith.constant 1.000000e+00 : f32
    %513 = vector.broadcast %cst_25 : f32 to vector<1x256xf32>
    %514 = arith.divf %513, %512 : vector<1x256xf32>
    %c0_26 = arith.constant 0 : index
    %c0_27 = arith.constant 0 : index
    %c0_28 = arith.constant 0 : index
    %515 = vector.load %arg2[%c0_26, %c0_27, %c0_28] : memref<1x4x256xf32, #tpu.memory_space<vmem>>, vector<1x4x256xf32>
    %516 = vector.shape_cast %514 : vector<1x256xf32> to vector<1x1x256xf32>
    %517 = vector.broadcast %516 : vector<1x1x256xf32> to vector<1x4x256xf32>
    %518 = arith.mulf %515, %517 : vector<1x4x256xf32>
    %c0_29 = arith.constant 0 : index
    %c0_30 = arith.constant 0 : index
    %c0_31 = arith.constant 0 : index
    %519 = vector.load %arg3[%c0_29, %c0_30, %c0_31] : memref<1x4x256xf32, #tpu.memory_space<vmem>>, vector<1x4x256xf32>
    tpu.vector_store %arg3[%c0_29, %c0_30, %c0_31], %518 {strides = array<i32>} : memref<1x4x256xf32, #tpu.memory_space<vmem>>, vector<1x4x256xf32>,
    return
  }
  func.func @transform_0(%arg0: i32) -> i32 {
    %c0_i32 = arith.constant 0 : i32
    %c0_i32_0 = arith.constant 0 : i32
    return %c0_i32 : i32
  }
  func.func @transform_1(%arg0: i32) -> (i32, i32, i32) {
    %c0_i32 = arith.constant 0 : i32
    %c0_i32_0 = arith.constant 0 : i32
    %c0_i32_1 = arith.constant 0 : i32
    return %arg0, %c0_i32, %c0_i32_0 : i32, i32, i32
  }
  func.func @transform_2(%arg0: i32) -> (i32, i32, i32) {
    %c0_i32 = arith.constant 0 : i32
    %c0_i32_0 = arith.constant 0 : i32
    %c0_i32_1 = arith.constant 0 : i32
    return %arg0, %c0_i32, %c0_i32_0 : i32, i32, i32
  }
}

</mosaic_0001>

<llo_original>
// kernel: tpu_custom_call.1
$region0: #{tpu_custom_call.1}
  #allocation0 [shape = 'u32[]', space=smem, size = 0x4, offset = 0x4, fixed_abs, tag = 'smem constant byte address 0x4 - core index']
  #allocation1 [shape = 'u32[72,128]{1,0:T(1,128)}', space=vmem, size = 0x9000, scoped, tag = 'internal scratch']
  %s0 = inlined_call_operand.hbm [shape: f32[99], index: 0, kind: input, shape index: {}]
  %s1 = inlined_call_operand.hbm [shape: f32[2,4,256], index: 1, kind: input, shape index: {}]
  %s2 = inlined_call_operand.hbm [shape: f32[2,4,256], index: 2, kind: output, shape index: {}]
  %s3 = sld [smem:[#allocation0]]
  $region49: #{tpu_custom_call.1} parent=0
    _
  %s5 = ssub.s32 1, %s3
  %s6 = scalar_select 0, %s5, %s3
  $region1: #{tpu_custom_call.1} parent=0
    #allocation2 [shape = 'u8[512]{0}', space=smem, size = 0x200, scoped, tag = 'input window, operand 0, single buffered']
    #allocation3 [shape = 's32[2]{0}', space=sflag, size = 0x8, scoped, tag = 'scoped memory for tpu_custom_call.1']
    #allocation4 [shape = 's32[2]{0}', space=sflag, size = 0x8, scoped, tag = 'scoped memory for tpu_custom_call.1']
    #allocation5 [shape = 's32[2]{0}', space=sflag, size = 0x8, scoped, tag = 'scoped memory for tpu_custom_call.1']
    #allocation6 [shape = 'u8[8192]{0}', space=vmem, size = 0x2000, scoped, tag = 'input window, operand 1']
    #allocation7 [shape = 'u8[8192]{0}', space=vmem, size = 0x2000, scoped, tag = 'output window, operand 0']
    %7 = vsyncpa [#allocation5], 0
    %8 = vsyncpa [#allocation3], 0
    %s9 = scalar_lea.sflag [#allocation3], 1
    %10 = vsyncpa %s9, 0
    %11 = vsyncpa [#allocation4], 0
    %s12 = scalar_lea.sflag [#allocation4], 1
    %13 = vsyncpa %s12, 0
    loop: start=0, step=1, limit=4
    $region2: #{tpu_custom_call.1} parent=1 // loop_pre_header
      _
    $region3: #{tpu_custom_call.1} parent=1 // loop_header
      %s15 = sphi 0, %s19
      %p16 = scmp.ge.s32.totalorder %s15, 4
      %s23 = sphi 0, %s23
      %s25 = sphi 0, %s23
      %s26 = sphi 0, %s25
      %s40 = sphi 0, %s26
      %s46 = sphi 0, %s48
      %s49 = sphi 0, %s46
      %s50 = sphi 0, %s49
      %s66 = sphi 0, %s50
      %s72 = sphi 0, %s74
      %s75 = sphi 0, %s72
      %s76 = sphi 0, %s75
      %s92 = sphi 0, %s76
    $region4: #{tpu_custom_call.1} parent=1 // loop_header_branch
      %18 = sbr.rel (%p16) target = $region8
    $region5: #{tpu_custom_call.1} parent=1 // loop_body
      %s20 = ssub.s32 %s15, 1
      %s21 = ssub.s32 %s15, 2
      %s22 = sadd.s32 %s15, 1
      %s24 = sadd.s32 %s23, 1
      %p27 = scmp.eq.s32.totalorder %s15, 1
      %p28 = scmp.ne.s32.totalorder %s23, %s25
      %p29 = scmp.eq.s32.totalorder %s15, 0
      %p30 = por %p28, %p29
      %p31 = scmp.ne.s32.totalorder %s23, %s25
      %p32 = scmp.eq.s32.totalorder %s20, 1
      %p33 = por %p31, %p32
      %p34 = scmp.ne.s32.totalorder %s25, %s26
      %p35 = scmp.eq.s32.totalorder %s20, 0
      %p36 = por %p34, %p35
      %p37 = scmp.ne.s32.totalorder %s25, %s26
      %p38 = scmp.eq.s32.totalorder %s21, 1
      %p39 = por %p37, %p38
      %p41 = scmp.ne.s32.totalorder %s26, %s40
      %p42 = scmp.eq.s32.totalorder %s21, 0
      %p43 = por %p41, %p42
      %s44 = ssub.s32 %s15, %s22
      %p45 = scmp.eq.s32.totalorder %s44, 0
      %s47 = sadd.s32 %s46, 1
      %s48 = scalar_select %p45, %s46, %s47
      %p51 = pneg %p45
      %p52 = scmp.eq.s32.totalorder %s15, 1
      %p53 = por %p51, %p52
      %p54 = scmp.ne.s32.totalorder %s46, %s49
      %p55 = scmp.eq.s32.totalorder %s15, 0
      %p56 = por %p54, %p55
      %p57 = scmp.ne.s32.totalorder %s46, %s49
      %p58 = scmp.eq.s32.totalorder %s20, 1
      %p59 = por %p57, %p58
      %p60 = scmp.ne.s32.totalorder %s49, %s50
      %p61 = scmp.eq.s32.totalorder %s20, 0
      %p62 = por %p60, %p61
      %p63 = scmp.ne.s32.totalorder %s49, %s50
      %p64 = scmp.eq.s32.totalorder %s21, 1
      %p65 = por %p63, %p64
      %p67 = scmp.ne.s32.totalorder %s50, %s66
      %p68 = scmp.eq.s32.totalorder %s21, 0
      %p69 = por %p67, %p68
      %s70 = ssub.s32 %s15, %s22
      %p71 = scmp.eq.s32.totalorder %s70, 0
      %s73 = sadd.s32 %s72, 1
      %s74 = scalar_select %p71, %s72, %s73
      %p77 = pneg %p71
      %p78 = scmp.eq.s32.totalorder %s15, 1
      %p79 = por %p77, %p78
      %p80 = scmp.ne.s32.totalorder %s72, %s75
      %p81 = scmp.eq.s32.totalorder %s15, 0
      %p82 = por %p80, %p81
      %p83 = scmp.ne.s32.totalorder %s72, %s75
      %p84 = scmp.eq.s32.totalorder %s20, 1
      %p85 = por %p83, %p84
      %p86 = scmp.ne.s32.totalorder %s75, %s76
      %p87 = scmp.eq.s32.totalorder %s20, 0
      %p88 = por %p86, %p87
      %p89 = scmp.ne.s32.totalorder %s75, %s76
      %p90 = scmp.eq.s32.totalorder %s21, 1
      %p91 = por %p89, %p90
      %p93 = scmp.ne.s32.totalorder %s76, %s92
      %p94 = scmp.eq.s32.totalorder %s21, 0
      %p95 = por %p93, %p94
      %p96 = scmp.le.s32.totalorder 1, %s15
      %p97 = scmp.lt.s32.totalorder %s15, 3
      %p98 = pnand %p96, %p97
      %p99 = pneg %p98
      // Predicated region
      $region9: #{tpu_custom_call.1} parent=5 // pred_check
        _
      $region10: #{tpu_custom_call.1} parent=5 // pred_check_branch
        %101 = sbr.rel (%p98) target = $region12
      $region11: #{tpu_custom_call.1} parent=5 // pred_region
        %s102 = ssub.s32 %s15, 1
        // Predicated region
        $region13: #{tpu_custom_call.1} parent=11 // pred_check
          %p103 = pneg %p36
        $region14: #{tpu_custom_call.1} parent=11 // pred_check_branch
          %105 = sbr.rel (%p103) target = $region16
        $region15: #{tpu_custom_call.1} parent=11 // pred_region
          %107 = vsyncadd [#allocation5], 0
          %s109 = sshll.u32 %s0, 4
          %s110 = int_to_ptr.hbm [resolvable:$true] %s109
          %112 = dma.hbm_to_smem %s110, 16, [#allocation2], [#allocation5]
        $region16: #{tpu_custom_call.1} parent=11 // pred_fallthru
          _
      $region12: #{tpu_custom_call.1} parent=5 // pred_fallthru
        _
      %p113 = scmp.lt.s32.totalorder %s15, 2
      // Predicated region
      $region17: #{tpu_custom_call.1} parent=5 // pred_check
        %p114 = pneg %p113
      $region18: #{tpu_custom_call.1} parent=5 // pred_check_branch
        %116 = sbr.rel (%p114) target = $region20
      $region19: #{tpu_custom_call.1} parent=5 // pred_region
        // Predicated region
        $region21: #{tpu_custom_call.1} parent=19 // pred_check
          %p117 = pneg %p56
        $region22: #{tpu_custom_call.1} parent=19 // pred_check_branch
          %119 = sbr.rel (%p117) target = $region24
        $region23: #{tpu_custom_call.1} parent=19 // pred_region
          %s120 = sand.u32 %s46, 1
          %s121 = scalar_lea.sflag [#allocation3], %s120
          %s122 = sand.u32 %s46, 1
          %s123 = smul.addr %s122, 8
          %s124 = scalar_lea.vmem [#allocation6], %s123
          %126 = vsyncadd %s121, 0
          %s127 = smul.addr %s15, 2
          %s128 = smul.addr %s127, 4
          %s129 = scalar_lea.hbm %s1, %s128
          %s131 = sshll.u32 %s129, 4
          %s132 = int_to_ptr.hbm [resolvable:$true] %s131
          %s133 = sshll.u32 %s124, 4
          %s134 = int_to_ptr.vmem [resolvable:$true] %s133
          %136 = dma.hbm_to_vmem [thread:$0]  %s132, 128, %s134, %s121
        $region24: #{tpu_custom_call.1} parent=19 // pred_fallthru
          _
      $region20: #{tpu_custom_call.1} parent=5 // pred_fallthru
        _
      %p137 = scmp.le.s32.totalorder 1, %s15
      %p138 = scmp.lt.s32.totalorder %s15, 3
      %p139 = pnand %p137, %p138
      %p140 = pneg %p139
      // Predicated region
      $region25: #{tpu_custom_call.1} parent=5 // pred_check
        _
      $region26: #{tpu_custom_call.1} parent=5 // pred_check_branch
        %142 = sbr.rel (%p139) target = $region28
      $region27: #{tpu_custom_call.1} parent=5 // pred_region
        %s143 = ssub.s32 %s15, 1
        // Predicated region
        $region29: #{tpu_custom_call.1} parent=27 // pred_check
          %p144 = pneg %p36
        $region30: #{tpu_custom_call.1} parent=27 // pred_check_branch
          %146 = sbr.rel (%p144) target = $region32
        $region31: #{tpu_custom_call.1} parent=27 // pred_region
          %148 = dma.done [#allocation5], 16
        $region32: #{tpu_custom_call.1} parent=27 // pred_fallthru
          _
        %s149 = sand.u32 %s49, 1
        %s150 = scalar_lea.sflag [#allocation3], %s149
        %s151 = sand.u32 %s49, 1
        %s152 = smul.addr %s151, 8
        %s153 = scalar_lea.vmem [#allocation6], %s152
        // Predicated region
        $region33: #{tpu_custom_call.1} parent=27 // pred_check
          %p154 = pneg %p62
        $region34: #{tpu_custom_call.1} parent=27 // pred_check_branch
          %156 = sbr.rel (%p154) target = $region36
        $region35: #{tpu_custom_call.1} parent=27 // pred_region
          %158 = dma.done %s150, 128
        $region36: #{tpu_custom_call.1} parent=27 // pred_fallthru
          _
        %159 = sfence
        %p160 = pneg %p36
        %p161 = pneg %p33
        %s162 = sand.u32 %s49, 1
        %s163 = scalar_lea.sflag [#allocation3], %s162
        %s164 = sand.u32 %s49, 1
        %s165 = smul.addr %s164, 8
        %s166 = scalar_lea.vmem [#allocation6], %s165
        %p167 = pneg %p62
        %p168 = pneg %p59
        %p169 = pneg %p88
        %p170 = pneg %p85
        %s171 = sand.u32 %s75, 1
        %s172 = scalar_lea.sflag [#allocation4], %s171
        %s173 = sand.u32 %s75, 1
        %s174 = smul.addr %s173, 8
        %s175 = scalar_lea.vmem [#allocation7], %s174
        %v176 = vld [vmem:[%s153] sm:$0xff]
        %178 = vst [vmem:[#allocation1] ss:$2 sm:$0xff] %v176
        %v179 = vld.sshfl [vmem:[#allocation1] sm:$0xff pattern:$0x75316420]
        %v180 = vld.sshfl [vmem:[#allocation1 + $0x8] sm:$0xff pattern:$0x75316420]
        %vm183 = vcmask 1043456
        %v184 = vsel %vm183, %v179, -inf
        %v185 = vrot.slane %v184, 4
        %v186 = vmax.f32 %v184, %v185
        %v187 = vrot.slane %v186, 2
        %v188 = vmax.f32 %v186, %v187
        %v189 = vrot.slane %v188, 1
        %v190 = vmax.f32 %v188, %v189
        %v191 = vsel %vm183, %v180, -inf
        %v192 = vrot.slane %v191, 4
        %v193 = vmax.f32 %v191, %v192
        %v194 = vrot.slane %v193, 2
        %v195 = vmax.f32 %v193, %v194
        %v196 = vrot.slane %v195, 1
        %v197 = vmax.f32 %v195, %v196
        %198 = vst [vmem:[#allocation1] ss:$2 sm:$0xff] %v176
        %v199 = vld.sshfl [vmem:[#allocation1] sm:$0xff pattern:$0x75316420]
        %v200 = vld.sshfl [vmem:[#allocation1 + $0x8] sm:$0xff pattern:$0x75316420]
        %v203 = vsel %vm183, %v199, 0.0
        %v204 = vrot.slane %v203, 4
        %v205 = vadd.f32 %v203, %v204
        %v206 = vrot.slane %v205, 2
        %v207 = vadd.f32 %v205, %v206
        %v208 = vrot.slane %v207, 1
        %v209 = vadd.f32 %v207, %v208
        %v210 = vsel %vm183, %v200, 0.0
        %v211 = vrot.slane %v210, 4
        %v212 = vadd.f32 %v210, %v211
        %v213 = vrot.slane %v212, 2
        %v214 = vadd.f32 %v212, %v213
        %v215 = vrot.slane %v214, 1
        %v216 = vadd.f32 %v214, %v215
        %v217 = vmul.f32 %v209, 0.25
        %v218 = vmul.f32 %v216, 0.25
        %v219 = vlaneseq
        %v220 = vand.u32 %v219, 127
        %v221 = vadd.s32 %v220, 128
        %v222 = vadd.s32 %v220, 256
        %vm223 = vcmp.lt.s32.totalorder %v220, 0
        %v224 = vsub.s32 0, %v220
        %v225 = vsel %vm223, %v224, %v220
        %v226 = vshrl.u32 %v225, 4
        %v227 = vand.u32 %v225, 15
        %v228 = vsub.s32 0, %v227
        %v229 = vsel %vm223, %v228, %v227
        %vm230 = vcmp.lt.s32.totalorder %v221, 0
        %v231 = vsub.s32 0, %v221
        %v232 = vsel %vm230, %v231, %v221
        %v233 = vshrl.u32 %v232, 4
        %v234 = vand.u32 %v232, 15
        %v235 = vsub.s32 0, %v234
        %v236 = vsel %vm230, %v235, %v234
        %vm237 = vcmp.lt.s32.totalorder %v222, 0
        %v238 = vsub.s32 0, %v222
        %v239 = vsel %vm237, %v238, %v222
        %v240 = vshrl.u32 %v239, 4
        %v241 = vand.u32 %v239, 15
        %v242 = vsub.s32 0, %v241
        %v243 = vsel %vm237, %v242, %v241
        %vm244 = vcmp.ne.s32.totalorder %v229, 0
        %vm245 = vcmp.ne.s32.totalorder %v236, 0
        %vm246 = vcmp.ne.s32.totalorder %v243, 0
        %vm247 = vcmp.lt.s32.totalorder %v229, 0
        %vm248 = vcmp.lt.s32.totalorder %v236, 0
        %vm249 = vcmp.lt.s32.totalorder %v243, 0
        %vm250 = vmand %vm247, %vm244
        %vm251 = vmand %vm248, %vm245
        %vm252 = vmand %vm249, %vm246
        %v253 = vadd.s32 %v229, 16
        %v254 = vadd.s32 %v236, 16
        %v255 = vadd.s32 %v243, 16
        %v256 = vsel %vm250, %v253, %v229
        %v257 = vsel %vm251, %v254, %v236
        %v258 = vsel %vm252, %v255, %v243
        %v259 = vadd.s32 %v256, 4294967293
        %v260 = vadd.s32 %v257, 4294967293
        %v261 = vadd.s32 %v258, 4294967293
        %vm262 = vcmp.ge.s32.totalorder %v259, 0
        %vm263 = vcmp.ge.s32.totalorder %v260, 0
        %vm264 = vcmp.ge.s32.totalorder %v261, 0
        %vm265 = vcmp.lt.s32.totalorder %v259, 16
        %vm266 = vcmp.lt.s32.totalorder %v260, 16
        %vm267 = vcmp.lt.s32.totalorder %v261, 16
        %vm268 = vmand %vm262, %vm265
        %vm269 = vmand %vm263, %vm266
        %vm270 = vmand %vm264, %vm267
        %v271 = vsel %vm268, 1, 0
        %v272 = vsel %vm269, 1, 0
        %v273 = vsel %vm270, 1, 0
        %v274 = vcvt.s32.f32 %v271
        %v275 = vcvt.s32.f32 %v272
        %v276 = vcvt.s32.f32 %v273
        %v277 = vadd.s32 %v256, 4294967294
        %v278 = vadd.s32 %v257, 4294967294
        %v279 = vadd.s32 %v258, 4294967294
        %vm280 = vcmp.ge.s32.totalorder %v277, 0
        %vm281 = vcmp.ge.s32.totalorder %v278, 0
        %vm282 = vcmp.ge.s32.totalorder %v279, 0
        %vm283 = vcmp.lt.s32.totalorder %v277, 16
        %vm284 = vcmp.lt.s32.totalorder %v278, 16
        %vm285 = vcmp.lt.s32.totalorder %v279, 16
        %vm286 = vmand %vm280, %vm283
        %vm287 = vmand %vm281, %vm284
        %vm288 = vmand %vm282, %vm285
        %v289 = vsel %vm286, 1, 0
        %v290 = vsel %vm287, 1, 0
        %v291 = vsel %vm288, 1, 0
        %v292 = vcvt.s32.f32 %v289
        %v293 = vcvt.s32.f32 %v290
        %v294 = vcvt.s32.f32 %v291
        %v295 = vadd.s32 %v256, 4294967295
        %v296 = vadd.s32 %v257, 4294967295
        %v297 = vadd.s32 %v258, 4294967295
        %vm298 = vcmp.ge.s32.totalorder %v295, 0
        %vm299 = vcmp.ge.s32.totalorder %v296, 0
        %vm300 = vcmp.ge.s32.totalorder %v297, 0
        %vm301 = vcmp.lt.s32.totalorder %v295, 16
        %vm302 = vcmp.lt.s32.totalorder %v296, 16
        %vm303 = vcmp.lt.s32.totalorder %v297, 16
        %vm304 = vmand %vm298, %vm301
        %vm305 = vmand %vm299, %vm302
        %vm306 = vmand %vm300, %vm303
        %v307 = vsel %vm304, 1, 0
        %v308 = vsel %vm305, 1, 0
        %v309 = vsel %vm306, 1, 0
        %v310 = vcvt.s32.f32 %v307
        %v311 = vcvt.s32.f32 %v308
        %v312 = vcvt.s32.f32 %v309
        %v313 = vadd.s32 %v256, 1
        %v314 = vadd.s32 %v257, 1
        %v315 = vadd.s32 %v258, 1
        %vm316 = vcmp.ge.s32.totalorder %v313, 0
        %vm317 = vcmp.ge.s32.totalorder %v314, 0
        %vm318 = vcmp.ge.s32.totalorder %v315, 0
        %vm319 = vcmp.lt.s32.totalorder %v313, 16
        %vm320 = vcmp.lt.s32.totalorder %v314, 16
        %vm321 = vcmp.lt.s32.totalorder %v315, 16
        %vm322 = vmand %vm316, %vm319
        %vm323 = vmand %vm317, %vm320
        %vm324 = vmand %vm318, %vm321
        %v325 = vsel %vm322, 1, 0
        %v326 = vsel %vm323, 1, 0
        %v327 = vsel %vm324, 1, 0
        %v328 = vcvt.s32.f32 %v325
        %v329 = vcvt.s32.f32 %v326
        %v330 = vcvt.s32.f32 %v327
        %v331 = vadd.s32 %v256, 2
        %v332 = vadd.s32 %v257, 2
        %v333 = vadd.s32 %v258, 2
        %vm334 = vcmp.ge.s32.totalorder %v331, 0
        %vm335 = vcmp.ge.s32.totalorder %v332, 0
        %vm336 = vcmp.ge.s32.totalorder %v333, 0
        %vm337 = vcmp.lt.s32.totalorder %v331, 16
        %vm338 = vcmp.lt.s32.totalorder %v332, 16
        %vm339 = vcmp.lt.s32.totalorder %v333, 16
        %vm340 = vmand %vm334, %vm337
        %vm341 = vmand %vm335, %vm338
        %vm342 = vmand %vm336, %vm339
        %v343 = vsel %vm340, 1, 0
        %v344 = vsel %vm341, 1, 0
        %v345 = vsel %vm342, 1, 0
        %v346 = vcvt.s32.f32 %v343
        %v347 = vcvt.s32.f32 %v344
        %v348 = vcvt.s32.f32 %v345
        %v349 = vadd.s32 %v256, 3
        %v350 = vadd.s32 %v257, 3
        %v351 = vadd.s32 %v258, 3
        %vm352 = vcmp.ge.s32.totalorder %v349, 0
        %vm353 = vcmp.ge.s32.totalorder %v350, 0
        %vm354 = vcmp.ge.s32.totalorder %v351, 0
        %vm355 = vcmp.lt.s32.totalorder %v349, 16
        %vm356 = vcmp.lt.s32.totalorder %v350, 16
        %vm357 = vcmp.lt.s32.totalorder %v351, 16
        %vm358 = vmand %vm352, %vm355
        %vm359 = vmand %vm353, %vm356
        %vm360 = vmand %vm354, %vm357
        %v361 = vsel %vm358, 1, 0
        %v362 = vsel %vm359, 1, 0
        %v363 = vsel %vm360, 1, 0
        %v364 = vcvt.s32.f32 %v361
        %v365 = vcvt.s32.f32 %v362
        %v366 = vcvt.s32.f32 %v363
        %369 = vrot.lane.b32.xlu0 %v190, 51
        %v370 = vpop.permute.xlu0 %369
        %371 = vrot.lane.b32.xlu0 %v197, 51
        %v372 = vpop.permute.xlu0 %371
        %vm373 = vcmask 416768
        %v374 = vsel %vm373, %v370, %v372
        %v378 = vsel %vm373, 0.0, %v370
        %v379 = vsel %vm373, %v372, 0.0
        %v380 = vmul.f32 %v378, %v274
        %v381 = vmul.f32 %v374, %v275
        %v382 = vmul.f32 %v379, %v276
        %s383 = sld [smem:[#allocation2]]
        %v384 = vstv %s383
        %v385 = vmul.f32 %v384, %v380
        %v386 = vmul.f32 %v384, %v381
        %s387 = sld [smem:[#allocation2 + $0x7]]
        %v388 = vstv %s387
        %v389 = vmul.f32 %v388, %v380
        %v390 = vmul.f32 %v388, %v381
        %v391 = vmul.f32 %v388, %v382
        %s392 = sld [smem:[#allocation2 + $0xe]]
        %v393 = vstv %s392
        %v394 = vmul.f32 %v393, %v380
        %v395 = vmul.f32 %v393, %v381
        %v396 = vmul.f32 %v393, %v382
        %s397 = sld [smem:[#allocation2 + $0x15]]
        %v398 = vstv %s397
        %v399 = vmul.f32 %v398, %v380
        %v400 = vmul.f32 %v398, %v381
        %v401 = vmul.f32 %v398, %v382
        %s402 = sld [smem:[#allocation2 + $0x1c]]
        %v403 = vstv %s402
        %v404 = vmul.f32 %v403, %v380
        %v405 = vmul.f32 %v403, %v381
        %v406 = vmul.f32 %v403, %v382
        %s407 = sld [smem:[#allocation2 + $0x23]]
        %v408 = vstv %s407
        %v409 = vmul.f32 %v408, %v380
        %v410 = vmul.f32 %v408, %v381
        %v411 = vmul.f32 %v408, %v382
        %s412 = sld [smem:[#allocation2 + $0x2a]]
        %v413 = vstv %s412
        %v414 = vmul.f32 %v413, %v380
        %v415 = vmul.f32 %v413, %v381
        %v416 = vmul.f32 %v413, %v382
        %420 = vrot.lane.b32.xlu0 %v292, 1
        %v421 = vpop.permute.xlu0 %420
        %422 = vrot.lane.b32.xlu0 %v293, 1
        %v423 = vpop.permute.xlu0 %422
        %424 = vrot.lane.b32.xlu0 %v294, 1
        %v425 = vpop.permute.xlu0 %424
        %vm426 = vcmask 7168
        %v427 = vsel %vm426, %v421, %v423
        %v428 = vsel %vm426, %v423, %v425
        %v432 = vmul.f32 %v378, %v421
        %v433 = vmul.f32 %v374, %v427
        %v434 = vmul.f32 %v379, %v428
        %s435 = sld [smem:[#allocation2 + $0x1]]
        %v436 = vstv %s435
        %v437 = vmul.f32 %v436, %v432
        %v438 = vmul.f32 %v436, %v433
        %v439 = vmul.f32 %v436, %v434
        %443 = vrot.lane.b32.xlu0 %v437, 127
        %v444 = vpop.permute.xlu0 %443
        %445 = vrot.lane.b32.xlu0 %v438, 127
        %v446 = vpop.permute.xlu0 %445
        %447 = vrot.lane.b32.xlu0 %v439, 127
        %v448 = vpop.permute.xlu0 %447
        %vm449 = vcmask 1039360
        %v450 = vsel %vm449, %v444, %v446
        %v451 = vsel %vm449, %v446, %v448
        %v454 = vadd.f32 %v385, %v450
        %v455 = vadd.f32 %v386, %v451
        %s456 = sld [smem:[#allocation2 + $0x8]]
        %v457 = vstv %s456
        %v458 = vmul.f32 %v457, %v432
        %v459 = vmul.f32 %v457, %v433
        %v460 = vmul.f32 %v457, %v434
        %464 = vrot.lane.b32.xlu0 %v458, 127
        %v465 = vpop.permute.xlu0 %464
        %466 = vrot.lane.b32.xlu0 %v459, 127
        %v467 = vpop.permute.xlu0 %466
        %468 = vrot.lane.b32.xlu0 %v460, 127
        %v469 = vpop.permute.xlu0 %468
        %v470 = vsel %vm449, %v465, %v467
        %v471 = vsel %vm449, %v467, %v469
        %v475 = vadd.f32 %v389, %v470
        %v476 = vadd.f32 %v390, %v471
        %v477 = vadd.f32 %v391, %v469
        %s478 = sld [smem:[#allocation2 + $0xf]]
        %v479 = vstv %s478
        %v480 = vmul.f32 %v479, %v432
        %v481 = vmul.f32 %v479, %v433
        %v482 = vmul.f32 %v479, %v434
        %486 = vrot.lane.b32.xlu0 %v480, 127
        %v487 = vpop.permute.xlu0 %486
        %488 = vrot.lane.b32.xlu0 %v481, 127
        %v489 = vpop.permute.xlu0 %488
        %490 = vrot.lane.b32.xlu0 %v482, 127
        %v491 = vpop.permute.xlu0 %490
        %v492 = vsel %vm449, %v487, %v489
        %v493 = vsel %vm449, %v489, %v491
        %v497 = vadd.f32 %v394, %v492
        %v498 = vadd.f32 %v395, %v493
        %v499 = vadd.f32 %v396, %v491
        %s500 = sld [smem:[#allocation2 + $0x16]]
        %v501 = vstv %s500
        %v502 = vmul.f32 %v501, %v432
        %v503 = vmul.f32 %v501, %v433
        %v504 = vmul.f32 %v501, %v434
        %508 = vrot.lane.b32.xlu0 %v502, 127
        %v509 = vpop.permute.xlu0 %508
        %510 = vrot.lane.b32.xlu0 %v503, 127
        %v511 = vpop.permute.xlu0 %510
        %512 = vrot.lane.b32.xlu0 %v504, 127
        %v513 = vpop.permute.xlu0 %512
        %v514 = vsel %vm449, %v509, %v511
        %v515 = vsel %vm449, %v511, %v513
        %v519 = vadd.f32 %v399, %v514
        %v520 = vadd.f32 %v400, %v515
        %v521 = vadd.f32 %v401, %v513
        %s522 = sld [smem:[#allocation2 + $0x1d]]
        %v523 = vstv %s522
        %v524 = vmul.f32 %v523, %v432
        %v525 = vmul.f32 %v523, %v433
        %v526 = vmul.f32 %v523, %v434
        %530 = vrot.lane.b32.xlu0 %v524, 127
        %v531 = vpop.permute.xlu0 %530
        %532 = vrot.lane.b32.xlu0 %v525, 127
        %v533 = vpop.permute.xlu0 %532
        %534 = vrot.lane.b32.xlu0 %v526, 127
        %v535 = vpop.permute.xlu0 %534
        %v536 = vsel %vm449, %v531, %v533
        %v537 = vsel %vm449, %v533, %v535
        %v541 = vadd.f32 %v404, %v536
        %v542 = vadd.f32 %v405, %v537
        %v543 = vadd.f32 %v406, %v535
        %s544 = sld [smem:[#allocation2 + $0x24]]
        %v545 = vstv %s544
        %v546 = vmul.f32 %v545, %v432
        %v547 = vmul.f32 %v545, %v433
        %v548 = vmul.f32 %v545, %v434
        %552 = vrot.lane.b32.xlu0 %v546, 127
        %v553 = vpop.permute.xlu0 %552
        %554 = vrot.lane.b32.xlu0 %v547, 127
        %v555 = vpop.permute.xlu0 %554
        %556 = vrot.lane.b32.xlu0 %v548, 127
        %v557 = vpop.permute.xlu0 %556
        %v558 = vsel %vm449, %v553, %v555
        %v559 = vsel %vm449, %v555, %v557
        %v563 = vadd.f32 %v409, %v558
        %v564 = vadd.f32 %v410, %v559
        %v565 = vadd.f32 %v411, %v557
        %s566 = sld [smem:[#allocation2 + $0x2b]]
        %v567 = vstv %s566
        %v568 = vmul.f32 %v567, %v432
        %v569 = vmul.f32 %v567, %v433
        %v570 = vmul.f32 %v567, %v434
        %574 = vrot.lane.b32.xlu0 %v568, 127
        %v575 = vpop.permute.xlu0 %574
        %576 = vrot.lane.b32.xlu0 %v569, 127
        %v577 = vpop.permute.xlu0 %576
        %578 = vrot.lane.b32.xlu0 %v570, 127
        %v579 = vpop.permute.xlu0 %578
        %v580 = vsel %vm449, %v575, %v577
        %v581 = vsel %vm449, %v577, %v579
        %v585 = vadd.f32 %v414, %v580
        %v586 = vadd.f32 %v415, %v581
        %v587 = vadd.f32 %v416, %v579
        %591 = vrot.lane.b32.xlu0 %v310, 2
        %v592 = vpop.permute.xlu0 %591
        %593 = vrot.lane.b32.xlu0 %v311, 2
        %v594 = vpop.permute.xlu0 %593
        %595 = vrot.lane.b32.xlu0 %v312, 2
        %v596 = vpop.permute.xlu0 %595
        %vm597 = vcmask 15360
        %v598 = vsel %vm597, %v592, %v594
        %v599 = vsel %vm597, %v594, %v596
        %v603 = vmul.f32 %v378, %v592
        %v604 = vmul.f32 %v374, %v598
        %v605 = vmul.f32 %v379, %v599
        %s606 = sld [smem:[#allocation2 + $0x2]]
        %v607 = vstv %s606
        %v608 = vmul.f32 %v607, %v603
        %v609 = vmul.f32 %v607, %v604
        %v610 = vmul.f32 %v607, %v605
        %614 = vrot.lane.b32.xlu0 %v608, 126
        %v615 = vpop.permute.xlu0 %614
        %616 = vrot.lane.b32.xlu0 %v609, 126
        %v617 = vpop.permute.xlu0 %616
        %618 = vrot.lane.b32.xlu0 %v610, 126
        %v619 = vpop.permute.xlu0 %618
        %vm620 = vcmask 1031168
        %v621 = vsel %vm620, %v615, %v617
        %v622 = vsel %vm620, %v617, %v619
        %v625 = vadd.f32 %v454, %v621
        %v626 = vadd.f32 %v455, %v622
        %s627 = sld [smem:[#allocation2 + $0x9]]
        %v628 = vstv %s627
        %v629 = vmul.f32 %v628, %v603
        %v630 = vmul.f32 %v628, %v604
        %v631 = vmul.f32 %v628, %v605
        %635 = vrot.lane.b32.xlu0 %v629, 126
        %v636 = vpop.permute.xlu0 %635
        %637 = vrot.lane.b32.xlu0 %v630, 126
        %v638 = vpop.permute.xlu0 %637
        %639 = vrot.lane.b32.xlu0 %v631, 126
        %v640 = vpop.permute.xlu0 %639
        %v641 = vsel %vm620, %v636, %v638
        %v642 = vsel %vm620, %v638, %v640
        %v646 = vadd.f32 %v475, %v641
        %v647 = vadd.f32 %v476, %v642
        %v648 = vadd.f32 %v477, %v640
        %s649 = sld [smem:[#allocation2 + $0x10]]
        %v650 = vstv %s649
        %v651 = vmul.f32 %v650, %v603
        %v652 = vmul.f32 %v650, %v604
        %v653 = vmul.f32 %v650, %v605
        %657 = vrot.lane.b32.xlu0 %v651, 126
        %v658 = vpop.permute.xlu0 %657
        %659 = vrot.lane.b32.xlu0 %v652, 126
        %v660 = vpop.permute.xlu0 %659
        %661 = vrot.lane.b32.xlu0 %v653, 126
        %v662 = vpop.permute.xlu0 %661
        %v663 = vsel %vm620, %v658, %v660
        %v664 = vsel %vm620, %v660, %v662
        %v668 = vadd.f32 %v497, %v663
        %v669 = vadd.f32 %v498, %v664
        %v670 = vadd.f32 %v499, %v662
        %s671 = sld [smem:[#allocation2 + $0x17]]
        %v672 = vstv %s671
        %v673 = vmul.f32 %v672, %v603
        %v674 = vmul.f32 %v672, %v604
        %v675 = vmul.f32 %v672, %v605
        %679 = vrot.lane.b32.xlu0 %v673, 126
        %v680 = vpop.permute.xlu0 %679
        %681 = vrot.lane.b32.xlu0 %v674, 126
        %v682 = vpop.permute.xlu0 %681
        %683 = vrot.lane.b32.xlu0 %v675, 126
        %v684 = vpop.permute.xlu0 %683
        %v685 = vsel %vm620, %v680, %v682
        %v686 = vsel %vm620, %v682, %v684
        %v690 = vadd.f32 %v519, %v685
        %v691 = vadd.f32 %v520, %v686
        %v692 = vadd.f32 %v521, %v684
        %s693 = sld [smem:[#allocation2 + $0x1e]]
        %v694 = vstv %s693
        %v695 = vmul.f32 %v694, %v603
        %v696 = vmul.f32 %v694, %v604
        %v697 = vmul.f32 %v694, %v605
        %701 = vrot.lane.b32.xlu0 %v695, 126
        %v702 = vpop.permute.xlu0 %701
        %703 = vrot.lane.b32.xlu0 %v696, 126
        %v704 = vpop.permute.xlu0 %703
        %705 = vrot.lane.b32.xlu0 %v697, 126
        %v706 = vpop.permute.xlu0 %705
        %v707 = vsel %vm620, %v702, %v704
        %v708 = vsel %vm620, %v704, %v706
        %v712 = vadd.f32 %v541, %v707
        %v713 = vadd.f32 %v542, %v708
        %v714 = vadd.f32 %v543, %v706
        %s715 = sld [smem:[#allocation2 + $0x25]]
        %v716 = vstv %s715
        %v717 = vmul.f32 %v716, %v603
        %v718 = vmul.f32 %v716, %v604
        %v719 = vmul.f32 %v716, %v605
        %723 = vrot.lane.b32.xlu0 %v717, 126
        %v724 = vpop.permute.xlu0 %723
        %725 = vrot.lane.b32.xlu0 %v718, 126
        %v726 = vpop.permute.xlu0 %725
        %727 = vrot.lane.b32.xlu0 %v719, 126
        %v728 = vpop.permute.xlu0 %727
        %v729 = vsel %vm620, %v724, %v726
        %v730 = vsel %vm620, %v726, %v728
        %v734 = vadd.f32 %v563, %v729
        %v735 = vadd.f32 %v564, %v730
        %v736 = vadd.f32 %v565, %v728
        %s737 = sld [smem:[#allocation2 + $0x2c]]
        %v738 = vstv %s737
        %v739 = vmul.f32 %v738, %v603
        %v740 = vmul.f32 %v738, %v604
        %v741 = vmul.f32 %v738, %v605
        %745 = vrot.lane.b32.xlu0 %v739, 126
        %v746 = vpop.permute.xlu0 %745
        %747 = vrot.lane.b32.xlu0 %v740, 126
        %v748 = vpop.permute.xlu0 %747
        %749 = vrot.lane.b32.xlu0 %v741, 126
        %v750 = vpop.permute.xlu0 %749
        %v751 = vsel %vm620, %v746, %v748
        %v752 = vsel %vm620, %v748, %v750
        %v756 = vadd.f32 %v585, %v751
        %v757 = vadd.f32 %v586, %v752
        %v758 = vadd.f32 %v587, %v750
        %s759 = sld [smem:[#allocation2 + $0x3]]
        %v760 = vstv %s759
        %v761 = vmul.f32 %v760, %v378
        %v762 = vmul.f32 %v760, %v374
        %v763 = vmul.f32 %v760, %v379
        %767 = vrot.lane.b32.xlu0 %v761, 125
        %v768 = vpop.permute.xlu0 %767
        %769 = vrot.lane.b32.xlu0 %v762, 125
        %v770 = vpop.permute.xlu0 %769
        %771 = vrot.lane.b32.xlu0 %v763, 125
        %v772 = vpop.permute.xlu0 %771
        %vm773 = vcmask 1022976
        %v774 = vsel %vm773, %v768, %v770
        %v775 = vsel %vm773, %v770, %v772
        %v778 = vadd.f32 %v625, %v774
        %v779 = vadd.f32 %v626, %v775
        %s780 = sld [smem:[#allocation2 + $0xa]]
        %v781 = vstv %s780
        %v782 = vmul.f32 %v781, %v378
        %v783 = vmul.f32 %v781, %v374
        %v784 = vmul.f32 %v781, %v379
        %788 = vrot.lane.b32.xlu0 %v782, 125
        %v789 = vpop.permute.xlu0 %788
        %790 = vrot.lane.b32.xlu0 %v783, 125
        %v791 = vpop.permute.xlu0 %790
        %792 = vrot.lane.b32.xlu0 %v784, 125
        %v793 = vpop.permute.xlu0 %792
        %v794 = vsel %vm773, %v789, %v791
        %v795 = vsel %vm773, %v791, %v793
        %v799 = vadd.f32 %v646, %v794
        %v800 = vadd.f32 %v647, %v795
        %v801 = vadd.f32 %v648, %v793
        %s802 = sld [smem:[#allocation2 + $0x11]]
        %v803 = vstv %s802
        %v804 = vmul.f32 %v803, %v378
        %v805 = vmul.f32 %v803, %v374
        %v806 = vmul.f32 %v803, %v379
        %810 = vrot.lane.b32.xlu0 %v804, 125
        %v811 = vpop.permute.xlu0 %810
        %812 = vrot.lane.b32.xlu0 %v805, 125
        %v813 = vpop.permute.xlu0 %812
        %814 = vrot.lane.b32.xlu0 %v806, 125
        %v815 = vpop.permute.xlu0 %814
        %v816 = vsel %vm773, %v811, %v813
        %v817 = vsel %vm773, %v813, %v815
        %v821 = vadd.f32 %v668, %v816
        %v822 = vadd.f32 %v669, %v817
        %v823 = vadd.f32 %v670, %v815
        %s824 = sld [smem:[#allocation2 + $0x18]]
        %v825 = vstv %s824
        %v826 = vmul.f32 %v825, %v378
        %v827 = vmul.f32 %v825, %v374
        %v828 = vmul.f32 %v825, %v379
        %832 = vrot.lane.b32.xlu0 %v826, 125
        %v833 = vpop.permute.xlu0 %832
        %834 = vrot.lane.b32.xlu0 %v827, 125
        %v835 = vpop.permute.xlu0 %834
        %836 = vrot.lane.b32.xlu0 %v828, 125
        %v837 = vpop.permute.xlu0 %836
        %v838 = vsel %vm773, %v833, %v835
        %v839 = vsel %vm773, %v835, %v837
        %v843 = vadd.f32 %v690, %v838
        %v844 = vadd.f32 %v691, %v839
        %v845 = vadd.f32 %v692, %v837
        %s846 = sld [smem:[#allocation2 + $0x1f]]
        %v847 = vstv %s846
        %v848 = vmul.f32 %v847, %v378
        %v849 = vmul.f32 %v847, %v374
        %v850 = vmul.f32 %v847, %v379
        %854 = vrot.lane.b32.xlu0 %v848, 125
        %v855 = vpop.permute.xlu0 %854
        %856 = vrot.lane.b32.xlu0 %v849, 125
        %v857 = vpop.permute.xlu0 %856
        %858 = vrot.lane.b32.xlu0 %v850, 125
        %v859 = vpop.permute.xlu0 %858
        %v860 = vsel %vm773, %v855, %v857
        %v861 = vsel %vm773, %v857, %v859
        %v865 = vadd.f32 %v712, %v860
        %v866 = vadd.f32 %v713, %v861
        %v867 = vadd.f32 %v714, %v859
        %s868 = sld [smem:[#allocation2 + $0x26]]
        %v869 = vstv %s868
        %v870 = vmul.f32 %v869, %v378
        %v871 = vmul.f32 %v869, %v374
        %v872 = vmul.f32 %v869, %v379
        %876 = vrot.lane.b32.xlu0 %v870, 125
        %v877 = vpop.permute.xlu0 %876
        %878 = vrot.lane.b32.xlu0 %v871, 125
        %v879 = vpop.permute.xlu0 %878
        %880 = vrot.lane.b32.xlu0 %v872, 125
        %v881 = vpop.permute.xlu0 %880
        %v882 = vsel %vm773, %v877, %v879
        %v883 = vsel %vm773, %v879, %v881
        %v887 = vadd.f32 %v734, %v882
        %v888 = vadd.f32 %v735, %v883
        %v889 = vadd.f32 %v736, %v881
        %s890 = sld [smem:[#allocation2 + $0x2d]]
        %v891 = vstv %s890
        %v892 = vmul.f32 %v891, %v378
        %v893 = vmul.f32 %v891, %v374
        %v894 = vmul.f32 %v891, %v379
        %898 = vrot.lane.b32.xlu0 %v892, 125
        %v899 = vpop.permute.xlu0 %898
        %900 = vrot.lane.b32.xlu0 %v893, 125
        %v901 = vpop.permute.xlu0 %900
        %902 = vrot.lane.b32.xlu0 %v894, 125
        %v903 = vpop.permute.xlu0 %902
        %v904 = vsel %vm773, %v899, %v901
        %v905 = vsel %vm773, %v901, %v903
        %v909 = vadd.f32 %v756, %v904
        %v910 = vadd.f32 %v757, %v905
        %v911 = vadd.f32 %v758, %v903
        %915 = vrot.lane.b32.xlu0 %v328, 4
        %v916 = vpop.permute.xlu0 %915
        %917 = vrot.lane.b32.xlu0 %v329, 4
        %v918 = vpop.permute.xlu0 %917
        %919 = vrot.lane.b32.xlu0 %v330, 4
        %v920 = vpop.permute.xlu0 %919
        %vm921 = vcmask 31744
        %v922 = vsel %vm921, %v916, %v918
        %v923 = vsel %vm921, %v918, %v920
        %v927 = vmul.f32 %v378, %v916
        %v928 = vmul.f32 %v374, %v922
        %v929 = vmul.f32 %v379, %v923
        %s930 = sld [smem:[#allocation2 + $0x4]]
        %v931 = vstv %s930
        %v932 = vmul.f32 %v931, %v927
        %v933 = vmul.f32 %v931, %v928
        %v934 = vmul.f32 %v931, %v929
        %938 = vrot.lane.b32.xlu0 %v932, 124
        %v939 = vpop.permute.xlu0 %938
        %940 = vrot.lane.b32.xlu0 %v933, 124
        %v941 = vpop.permute.xlu0 %940
        %942 = vrot.lane.b32.xlu0 %v934, 124
        %v943 = vpop.permute.xlu0 %942
        %vm944 = vcmask 1014784
        %v945 = vsel %vm944, %v939, %v941
        %v946 = vsel %vm944, %v941, %v943
        %v949 = vadd.f32 %v778, %v945
        %v950 = vadd.f32 %v779, %v946
        %s951 = sld [smem:[#allocation2 + $0xb]]
        %v952 = vstv %s951
        %v953 = vmul.f32 %v952, %v927
        %v954 = vmul.f32 %v952, %v928
        %v955 = vmul.f32 %v952, %v929
        %959 = vrot.lane.b32.xlu0 %v953, 124
        %v960 = vpop.permute.xlu0 %959
        %961 = vrot.lane.b32.xlu0 %v954, 124
        %v962 = vpop.permute.xlu0 %961
        %963 = vrot.lane.b32.xlu0 %v955, 124
        %v964 = vpop.permute.xlu0 %963
        %v965 = vsel %vm944, %v960, %v962
        %v966 = vsel %vm944, %v962, %v964
        %v970 = vadd.f32 %v799, %v965
        %v971 = vadd.f32 %v800, %v966
        %v972 = vadd.f32 %v801, %v964
        %s973 = sld [smem:[#allocation2 + $0x12]]
        %v974 = vstv %s973
        %v975 = vmul.f32 %v974, %v927
        %v976 = vmul.f32 %v974, %v928
        %v977 = vmul.f32 %v974, %v929
        %981 = vrot.lane.b32.xlu0 %v975, 124
        %v982 = vpop.permute.xlu0 %981
        %983 = vrot.lane.b32.xlu0 %v976, 124
        %v984 = vpop.permute.xlu0 %983
        %985 = vrot.lane.b32.xlu0 %v977, 124
        %v986 = vpop.permute.xlu0 %985
        %v987 = vsel %vm944, %v982, %v984
        %v988 = vsel %vm944, %v984, %v986
        %v992 = vadd.f32 %v821, %v987
        %v993 = vadd.f32 %v822, %v988
        %v994 = vadd.f32 %v823, %v986
        %s995 = sld [smem:[#allocation2 + $0x19]]
        %v996 = vstv %s995
        %v997 = vmul.f32 %v996, %v927
        %v998 = vmul.f32 %v996, %v928
        %v999 = vmul.f32 %v996, %v929
        %1003 = vrot.lane.b32.xlu0 %v997, 124
        %v1004 = vpop.permute.xlu0 %1003
        %1005 = vrot.lane.b32.xlu0 %v998, 124
        %v1006 = vpop.permute.xlu0 %1005
        %1007 = vrot.lane.b32.xlu0 %v999, 124
        %v1008 = vpop.permute.xlu0 %1007
        %v1009 = vsel %vm944, %v1004, %v1006
        %v1010 = vsel %vm944, %v1006, %v1008
        %v1014 = vadd.f32 %v843, %v1009
        %v1015 = vadd.f32 %v844, %v1010
        %v1016 = vadd.f32 %v845, %v1008
        %s1017 = sld [smem:[#allocation2 + $0x20]]
        %v1018 = vstv %s1017
        %v1019 = vmul.f32 %v1018, %v927
        %v1020 = vmul.f32 %v1018, %v928
        %v1021 = vmul.f32 %v1018, %v929
        %1025 = vrot.lane.b32.xlu0 %v1019, 124
        %v1026 = vpop.permute.xlu0 %1025
        %1027 = vrot.lane.b32.xlu0 %v1020, 124
        %v1028 = vpop.permute.xlu0 %1027
        %1029 = vrot.lane.b32.xlu0 %v1021, 124
        %v1030 = vpop.permute.xlu0 %1029
        %v1031 = vsel %vm944, %v1026, %v1028
        %v1032 = vsel %vm944, %v1028, %v1030
        %v1036 = vadd.f32 %v865, %v1031
        %v1037 = vadd.f32 %v866, %v1032
        %v1038 = vadd.f32 %v867, %v1030
        %s1039 = sld [smem:[#allocation2 + $0x27]]
        %v1040 = vstv %s1039
        %v1041 = vmul.f32 %v1040, %v927
        %v1042 = vmul.f32 %v1040, %v928
        %v1043 = vmul.f32 %v1040, %v929
        %1047 = vrot.lane.b32.xlu0 %v1041, 124
        %v1048 = vpop.permute.xlu0 %1047
        %1049 = vrot.lane.b32.xlu0 %v1042, 124
        %v1050 = vpop.permute.xlu0 %1049
        %1051 = vrot.lane.b32.xlu0 %v1043, 124
        %v1052 = vpop.permute.xlu0 %1051
        %v1053 = vsel %vm944, %v1048, %v1050
        %v1054 = vsel %vm944, %v1050, %v1052
        %v1058 = vadd.f32 %v887, %v1053
        %v1059 = vadd.f32 %v888, %v1054
        %v1060 = vadd.f32 %v889, %v1052
        %s1061 = sld [smem:[#allocation2 + $0x2e]]
        %v1062 = vstv %s1061
        %v1063 = vmul.f32 %v1062, %v927
        %v1064 = vmul.f32 %v1062, %v928
        %v1065 = vmul.f32 %v1062, %v929
        %1069 = vrot.lane.b32.xlu0 %v1063, 124
        %v1070 = vpop.permute.xlu0 %1069
        %1071 = vrot.lane.b32.xlu0 %v1064, 124
        %v1072 = vpop.permute.xlu0 %1071
        %1073 = vrot.lane.b32.xlu0 %v1065, 124
        %v1074 = vpop.permute.xlu0 %1073
        %v1075 = vsel %vm944, %v1070, %v1072
        %v1076 = vsel %vm944, %v1072, %v1074
        %v1080 = vadd.f32 %v909, %v1075
        %v1081 = vadd.f32 %v910, %v1076
        %v1082 = vadd.f32 %v911, %v1074
        %1086 = vrot.lane.b32.xlu0 %v346, 5
        %v1087 = vpop.permute.xlu0 %1086
        %1088 = vrot.lane.b32.xlu0 %v347, 5
        %v1089 = vpop.permute.xlu0 %1088
        %1090 = vrot.lane.b32.xlu0 %v348, 5
        %v1091 = vpop.permute.xlu0 %1090
        %vm1092 = vcmask 39936
        %v1093 = vsel %vm1092, %v1087, %v1089
        %v1094 = vsel %vm1092, %v1089, %v1091
        %v1098 = vmul.f32 %v378, %v1087
        %v1099 = vmul.f32 %v374, %v1093
        %v1100 = vmul.f32 %v379, %v1094
        %s1101 = sld [smem:[#allocation2 + $0x5]]
        %v1102 = vstv %s1101
        %v1103 = vmul.f32 %v1102, %v1098
        %v1104 = vmul.f32 %v1102, %v1099
        %v1105 = vmul.f32 %v1102, %v1100
        %1109 = vrot.lane.b32.xlu0 %v1103, 123
        %v1110 = vpop.permute.xlu0 %1109
        %1111 = vrot.lane.b32.xlu0 %v1104, 123
        %v1112 = vpop.permute.xlu0 %1111
        %1113 = vrot.lane.b32.xlu0 %v1105, 123
        %v1114 = vpop.permute.xlu0 %1113
        %vm1115 = vcmask 1006592
        %v1116 = vsel %vm1115, %v1110, %v1112
        %v1117 = vsel %vm1115, %v1112, %v1114
        %v1120 = vadd.f32 %v949, %v1116
        %v1121 = vadd.f32 %v950, %v1117
        %s1122 = sld [smem:[#allocation2 + $0xc]]
        %v1123 = vstv %s1122
        %v1124 = vmul.f32 %v1123, %v1098
        %v1125 = vmul.f32 %v1123, %v1099
        %v1126 = vmul.f32 %v1123, %v1100
        %1130 = vrot.lane.b32.xlu0 %v1124, 123
        %v1131 = vpop.permute.xlu0 %1130
        %1132 = vrot.lane.b32.xlu0 %v1125, 123
        %v1133 = vpop.permute.xlu0 %1132
        %1134 = vrot.lane.b32.xlu0 %v1126, 123
        %v1135 = vpop.permute.xlu0 %1134
        %v1136 = vsel %vm1115, %v1131, %v1133
        %v1137 = vsel %vm1115, %v1133, %v1135
        %v1141 = vadd.f32 %v970, %v1136
        %v1142 = vadd.f32 %v971, %v1137
        %v1143 = vadd.f32 %v972, %v1135
        %s1144 = sld [smem:[#allocation2 + $0x13]]
        %v1145 = vstv %s1144
        %v1146 = vmul.f32 %v1145, %v1098
        %v1147 = vmul.f32 %v1145, %v1099
        %v1148 = vmul.f32 %v1145, %v1100
        %1152 = vrot.lane.b32.xlu0 %v1146, 123
        %v1153 = vpop.permute.xlu0 %1152
        %1154 = vrot.lane.b32.xlu0 %v1147, 123
        %v1155 = vpop.permute.xlu0 %1154
        %1156 = vrot.lane.b32.xlu0 %v1148, 123
        %v1157 = vpop.permute.xlu0 %1156
        %v1158 = vsel %vm1115, %v1153, %v1155
        %v1159 = vsel %vm1115, %v1155, %v1157
        %v1163 = vadd.f32 %v992, %v1158
        %v1164 = vadd.f32 %v993, %v1159
        %v1165 = vadd.f32 %v994, %v1157
        %s1166 = sld [smem:[#allocation2 + $0x1a]]
        %v1167 = vstv %s1166
        %v1168 = vmul.f32 %v1167, %v1098
        %v1169 = vmul.f32 %v1167, %v1099
        %v1170 = vmul.f32 %v1167, %v1100
        %1174 = vrot.lane.b32.xlu0 %v1168, 123
        %v1175 = vpop.permute.xlu0 %1174
        %1176 = vrot.lane.b32.xlu0 %v1169, 123
        %v1177 = vpop.permute.xlu0 %1176
        %1178 = vrot.lane.b32.xlu0 %v1170, 123
        %v1179 = vpop.permute.xlu0 %1178
        %v1180 = vsel %vm1115, %v1175, %v1177
        %v1181 = vsel %vm1115, %v1177, %v1179
        %v1185 = vadd.f32 %v1014, %v1180
        %v1186 = vadd.f32 %v1015, %v1181
        %v1187 = vadd.f32 %v1016, %v1179
        %s1188 = sld [smem:[#allocation2 + $0x21]]
        %v1189 = vstv %s1188
        %v1190 = vmul.f32 %v1189, %v1098
        %v1191 = vmul.f32 %v1189, %v1099
        %v1192 = vmul.f32 %v1189, %v1100
        %1196 = vrot.lane.b32.xlu0 %v1190, 123
        %v1197 = vpop.permute.xlu0 %1196
        %1198 = vrot.lane.b32.xlu0 %v1191, 123
        %v1199 = vpop.permute.xlu0 %1198
        %1200 = vrot.lane.b32.xlu0 %v1192, 123
        %v1201 = vpop.permute.xlu0 %1200
        %v1202 = vsel %vm1115, %v1197, %v1199
        %v1203 = vsel %vm1115, %v1199, %v1201
        %v1207 = vadd.f32 %v1036, %v1202
        %v1208 = vadd.f32 %v1037, %v1203
        %v1209 = vadd.f32 %v1038, %v1201
        %s1210 = sld [smem:[#allocation2 + $0x28]]
        %v1211 = vstv %s1210
        %v1212 = vmul.f32 %v1211, %v1098
        %v1213 = vmul.f32 %v1211, %v1099
        %v1214 = vmul.f32 %v1211, %v1100
        %1218 = vrot.lane.b32.xlu0 %v1212, 123
        %v1219 = vpop.permute.xlu0 %1218
        %1220 = vrot.lane.b32.xlu0 %v1213, 123
        %v1221 = vpop.permute.xlu0 %1220
        %1222 = vrot.lane.b32.xlu0 %v1214, 123
        %v1223 = vpop.permute.xlu0 %1222
        %v1224 = vsel %vm1115, %v1219, %v1221
        %v1225 = vsel %vm1115, %v1221, %v1223
        %v1229 = vadd.f32 %v1058, %v1224
        %v1230 = vadd.f32 %v1059, %v1225
        %v1231 = vadd.f32 %v1060, %v1223
        %s1232 = sld [smem:[#allocation2 + $0x2f]]
        %v1233 = vstv %s1232
        %v1234 = vmul.f32 %v1233, %v1098
        %v1235 = vmul.f32 %v1233, %v1099
        %v1236 = vmul.f32 %v1233, %v1100
        %1240 = vrot.lane.b32.xlu0 %v1234, 123
        %v1241 = vpop.permute.xlu0 %1240
        %1242 = vrot.lane.b32.xlu0 %v1235, 123
        %v1243 = vpop.permute.xlu0 %1242
        %1244 = vrot.lane.b32.xlu0 %v1236, 123
        %v1245 = vpop.permute.xlu0 %1244
        %v1246 = vsel %vm1115, %v1241, %v1243
        %v1247 = vsel %vm1115, %v1243, %v1245
        %v1251 = vadd.f32 %v1080, %v1246
        %v1252 = vadd.f32 %v1081, %v1247
        %v1253 = vadd.f32 %v1082, %v1245
        %1257 = vrot.lane.b32.xlu0 %v364, 6
        %v1258 = vpop.permute.xlu0 %1257
        %1259 = vrot.lane.b32.xlu0 %v365, 6
        %v1260 = vpop.permute.xlu0 %1259
        %1261 = vrot.lane.b32.xlu0 %v366, 6
        %v1262 = vpop.permute.xlu0 %1261
        %vm1263 = vcmask 48128
        %v1264 = vsel %vm1263, %v1258, %v1260
        %v1265 = vsel %vm1263, %v1260, %v1262
        %v1269 = vmul.f32 %v378, %v1258
        %v1270 = vmul.f32 %v374, %v1264
        %v1271 = vmul.f32 %v379, %v1265
        %s1272 = sld [smem:[#allocation2 + $0x6]]
        %v1273 = vstv %s1272
        %v1274 = vmul.f32 %v1273, %v1269
        %v1275 = vmul.f32 %v1273, %v1270
        %v1276 = vmul.f32 %v1273, %v1271
        %1280 = vrot.lane.b32.xlu0 %v1274, 122
        %v1281 = vpop.permute.xlu0 %1280
        %1282 = vrot.lane.b32.xlu0 %v1275, 122
        %v1283 = vpop.permute.xlu0 %1282
        %1284 = vrot.lane.b32.xlu0 %v1276, 122
        %v1285 = vpop.permute.xlu0 %1284
        %vm1286 = vcmask 998400
        %v1287 = vsel %vm1286, %v1281, %v1283
        %v1288 = vsel %vm1286, %v1283, %v1285
        %v1291 = vadd.f32 %v1120, %v1287
        %v1292 = vadd.f32 %v1121, %v1288
        %s1293 = sld [smem:[#allocation2 + $0xd]]
        %v1294 = vstv %s1293
        %v1295 = vmul.f32 %v1294, %v1269
        %v1296 = vmul.f32 %v1294, %v1270
        %v1297 = vmul.f32 %v1294, %v1271
        %1301 = vrot.lane.b32.xlu0 %v1295, 122
        %v1302 = vpop.permute.xlu0 %1301
        %1303 = vrot.lane.b32.xlu0 %v1296, 122
        %v1304 = vpop.permute.xlu0 %1303
        %1305 = vrot.lane.b32.xlu0 %v1297, 122
        %v1306 = vpop.permute.xlu0 %1305
        %v1307 = vsel %vm1286, %v1302, %v1304
        %v1308 = vsel %vm1286, %v1304, %v1306
        %v1312 = vadd.f32 %v1141, %v1307
        %v1313 = vadd.f32 %v1142, %v1308
        %v1314 = vadd.f32 %v1143, %v1306
        %s1315 = sld [smem:[#allocation2 + $0x14]]
        %v1316 = vstv %s1315
        %v1317 = vmul.f32 %v1316, %v1269
        %v1318 = vmul.f32 %v1316, %v1270
        %v1319 = vmul.f32 %v1316, %v1271
        %1323 = vrot.lane.b32.xlu0 %v1317, 122
        %v1324 = vpop.permute.xlu0 %1323
        %1325 = vrot.lane.b32.xlu0 %v1318, 122
        %v1326 = vpop.permute.xlu0 %1325
        %1327 = vrot.lane.b32.xlu0 %v1319, 122
        %v1328 = vpop.permute.xlu0 %1327
        %v1329 = vsel %vm1286, %v1324, %v1326
        %v1330 = vsel %vm1286, %v1326, %v1328
        %v1334 = vadd.f32 %v1163, %v1329
        %v1335 = vadd.f32 %v1164, %v1330
        %v1336 = vadd.f32 %v1165, %v1328
        %s1337 = sld [smem:[#allocation2 + $0x1b]]
        %v1338 = vstv %s1337
        %v1339 = vmul.f32 %v1338, %v1269
        %v1340 = vmul.f32 %v1338, %v1270
        %v1341 = vmul.f32 %v1338, %v1271
        %1345 = vrot.lane.b32.xlu0 %v1339, 122
        %v1346 = vpop.permute.xlu0 %1345
        %1347 = vrot.lane.b32.xlu0 %v1340, 122
        %v1348 = vpop.permute.xlu0 %1347
        %1349 = vrot.lane.b32.xlu0 %v1341, 122
        %v1350 = vpop.permute.xlu0 %1349
        %v1351 = vsel %vm1286, %v1346, %v1348
        %v1352 = vsel %vm1286, %v1348, %v1350
        %v1356 = vadd.f32 %v1185, %v1351
        %v1357 = vadd.f32 %v1186, %v1352
        %v1358 = vadd.f32 %v1187, %v1350
        %s1359 = sld [smem:[#allocation2 + $0x22]]
        %v1360 = vstv %s1359
        %v1361 = vmul.f32 %v1360, %v1269
        %v1362 = vmul.f32 %v1360, %v1270
        %v1363 = vmul.f32 %v1360, %v1271
        %1367 = vrot.lane.b32.xlu0 %v1361, 122
        %v1368 = vpop.permute.xlu0 %1367
        %1369 = vrot.lane.b32.xlu0 %v1362, 122
        %v1370 = vpop.permute.xlu0 %1369
        %1371 = vrot.lane.b32.xlu0 %v1363, 122
        %v1372 = vpop.permute.xlu0 %1371
        %v1373 = vsel %vm1286, %v1368, %v1370
        %v1374 = vsel %vm1286, %v1370, %v1372
        %v1378 = vadd.f32 %v1207, %v1373
        %v1379 = vadd.f32 %v1208, %v1374
        %v1380 = vadd.f32 %v1209, %v1372
        %s1381 = sld [smem:[#allocation2 + $0x29]]
        %v1382 = vstv %s1381
        %v1383 = vmul.f32 %v1382, %v1269
        %v1384 = vmul.f32 %v1382, %v1270
        %v1385 = vmul.f32 %v1382, %v1271
        %1389 = vrot.lane.b32.xlu0 %v1383, 122
        %v1390 = vpop.permute.xlu0 %1389
        %1391 = vrot.lane.b32.xlu0 %v1384, 122
        %v1392 = vpop.permute.xlu0 %1391
        %1393 = vrot.lane.b32.xlu0 %v1385, 122
        %v1394 = vpop.permute.xlu0 %1393
        %v1395 = vsel %vm1286, %v1390, %v1392
        %v1396 = vsel %vm1286, %v1392, %v1394
        %v1400 = vadd.f32 %v1229, %v1395
        %v1401 = vadd.f32 %v1230, %v1396
        %v1402 = vadd.f32 %v1231, %v1394
        %s1403 = sld [smem:[#allocation2 + $0x30]]
        %v1404 = vstv %s1403
        %v1405 = vmul.f32 %v1404, %v1269
        %v1406 = vmul.f32 %v1404, %v1270
        %v1407 = vmul.f32 %v1404, %v1271
        %1411 = vrot.lane.b32.xlu0 %v1405, 122
        %v1412 = vpop.permute.xlu0 %1411
        %1413 = vrot.lane.b32.xlu0 %v1406, 122
        %v1414 = vpop.permute.xlu0 %1413
        %1415 = vrot.lane.b32.xlu0 %v1407, 122
        %v1416 = vpop.permute.xlu0 %1415
        %v1417 = vsel %vm1286, %v1412, %v1414
        %v1418 = vsel %vm1286, %v1414, %v1416
        %v1422 = vadd.f32 %v1251, %v1417
        %v1423 = vadd.f32 %v1252, %v1418
        %v1424 = vadd.f32 %v1253, %v1416
        %1427 = vrot.lane.b32.xlu0 %v217, 51
        %v1428 = vpop.permute.xlu0 %1427
        %1429 = vrot.lane.b32.xlu0 %v218, 51
        %v1430 = vpop.permute.xlu0 %1429
        %v1431 = vsel %vm373, %v1428, %v1430
        %v1435 = vsel %vm373, 0.0, %v1428
        %v1436 = vsel %vm373, %v1430, 0.0
        %v1437 = vmul.f32 %v1435, %v274
        %v1438 = vmul.f32 %v1431, %v275
        %v1439 = vmul.f32 %v1436, %v276
        %s1440 = sld [smem:[#allocation2 + $0x31]]
        %v1441 = vstv %s1440
        %v1442 = vmul.f32 %v1441, %v1437
        %v1443 = vmul.f32 %v1441, %v1438
        %v1444 = vadd.f32 %v1291, %v1442
        %v1445 = vadd.f32 %v1292, %v1443
        %s1446 = sld [smem:[#allocation2 + $0x38]]
        %v1447 = vstv %s1446
        %v1448 = vmul.f32 %v1447, %v1437
        %v1449 = vmul.f32 %v1447, %v1438
        %v1450 = vmul.f32 %v1447, %v1439
        %v1451 = vadd.f32 %v1312, %v1448
        %v1452 = vadd.f32 %v1313, %v1449
        %v1453 = vadd.f32 %v1314, %v1450
        %s1454 = sld [smem:[#allocation2 + $0x3f]]
        %v1455 = vstv %s1454
        %v1456 = vmul.f32 %v1455, %v1437
        %v1457 = vmul.f32 %v1455, %v1438
        %v1458 = vmul.f32 %v1455, %v1439
        %v1459 = vadd.f32 %v1334, %v1456
        %v1460 = vadd.f32 %v1335, %v1457
        %v1461 = vadd.f32 %v1336, %v1458
        %s1462 = sld [smem:[#allocation2 + $0x46]]
        %v1463 = vstv %s1462
        %v1464 = vmul.f32 %v1463, %v1437
        %v1465 = vmul.f32 %v1463, %v1438
        %v1466 = vmul.f32 %v1463, %v1439
        %v1467 = vadd.f32 %v1356, %v1464
        %v1468 = vadd.f32 %v1357, %v1465
        %v1469 = vadd.f32 %v1358, %v1466
        %s1470 = sld [smem:[#allocation2 + $0x4d]]
        %v1471 = vstv %s1470
        %v1472 = vmul.f32 %v1471, %v1437
        %v1473 = vmul.f32 %v1471, %v1438
        %v1474 = vmul.f32 %v1471, %v1439
        %v1475 = vadd.f32 %v1378, %v1472
        %v1476 = vadd.f32 %v1379, %v1473
        %v1477 = vadd.f32 %v1380, %v1474
        %s1478 = sld [smem:[#allocation2 + $0x54]]
        %v1479 = vstv %s1478
        %v1480 = vmul.f32 %v1479, %v1437
        %v1481 = vmul.f32 %v1479, %v1438
        %v1482 = vmul.f32 %v1479, %v1439
        %v1483 = vadd.f32 %v1400, %v1480
        %v1484 = vadd.f32 %v1401, %v1481
        %v1485 = vadd.f32 %v1402, %v1482
        %s1486 = sld [smem:[#allocation2 + $0x5b]]
        %v1487 = vstv %s1486
        %v1488 = vmul.f32 %v1487, %v1437
        %v1489 = vmul.f32 %v1487, %v1438
        %v1490 = vmul.f32 %v1487, %v1439
        %v1491 = vadd.f32 %v1422, %v1488
        %v1492 = vadd.f32 %v1423, %v1489
        %v1493 = vadd.f32 %v1424, %v1490
        %v1494 = vmul.f32 %v1435, %v421
        %v1495 = vmul.f32 %v1431, %v427
        %v1496 = vmul.f32 %v1436, %v428
        %s1497 = sld [smem:[#allocation2 + $0x32]]
        %v1498 = vstv %s1497
        %v1499 = vmul.f32 %v1498, %v1494
        %v1500 = vmul.f32 %v1498, %v1495
        %v1501 = vmul.f32 %v1498, %v1496
        %1505 = vrot.lane.b32.xlu0 %v1499, 127
        %v1506 = vpop.permute.xlu0 %1505
        %1507 = vrot.lane.b32.xlu0 %v1500, 127
        %v1508 = vpop.permute.xlu0 %1507
        %1509 = vrot.lane.b32.xlu0 %v1501, 127
        %v1510 = vpop.permute.xlu0 %1509
        %v1511 = vsel %vm449, %v1506, %v1508
        %v1512 = vsel %vm449, %v1508, %v1510
        %v1515 = vadd.f32 %v1444, %v1511
        %v1516 = vadd.f32 %v1445, %v1512
        %s1517 = sld [smem:[#allocation2 + $0x39]]
        %v1518 = vstv %s1517
        %v1519 = vmul.f32 %v1518, %v1494
        %v1520 = vmul.f32 %v1518, %v1495
        %v1521 = vmul.f32 %v1518, %v1496
        %1525 = vrot.lane.b32.xlu0 %v1519, 127
        %v1526 = vpop.permute.xlu0 %1525
        %1527 = vrot.lane.b32.xlu0 %v1520, 127
        %v1528 = vpop.permute.xlu0 %1527
        %1529 = vrot.lane.b32.xlu0 %v1521, 127
        %v1530 = vpop.permute.xlu0 %1529
        %v1531 = vsel %vm449, %v1526, %v1528
        %v1532 = vsel %vm449, %v1528, %v1530
        %v1536 = vadd.f32 %v1451, %v1531
        %v1537 = vadd.f32 %v1452, %v1532
        %v1538 = vadd.f32 %v1453, %v1530
        %s1539 = sld [smem:[#allocation2 + $0x40]]
        %v1540 = vstv %s1539
        %v1541 = vmul.f32 %v1540, %v1494
        %v1542 = vmul.f32 %v1540, %v1495
        %v1543 = vmul.f32 %v1540, %v1496
        %1547 = vrot.lane.b32.xlu0 %v1541, 127
        %v1548 = vpop.permute.xlu0 %1547
        %1549 = vrot.lane.b32.xlu0 %v1542, 127
        %v1550 = vpop.permute.xlu0 %1549
        %1551 = vrot.lane.b32.xlu0 %v1543, 127
        %v1552 = vpop.permute.xlu0 %1551
        %v1553 = vsel %vm449, %v1548, %v1550
        %v1554 = vsel %vm449, %v1550, %v1552
        %v1558 = vadd.f32 %v1459, %v1553
        %v1559 = vadd.f32 %v1460, %v1554
        %v1560 = vadd.f32 %v1461, %v1552
        %s1561 = sld [smem:[#allocation2 + $0x47]]
        %v1562 = vstv %s1561
        %v1563 = vmul.f32 %v1562, %v1494
        %v1564 = vmul.f32 %v1562, %v1495
        %v1565 = vmul.f32 %v1562, %v1496
        %1569 = vrot.lane.b32.xlu0 %v1563, 127
        %v1570 = vpop.permute.xlu0 %1569
        %1571 = vrot.lane.b32.xlu0 %v1564, 127
        %v1572 = vpop.permute.xlu0 %1571
        %1573 = vrot.lane.b32.xlu0 %v1565, 127
        %v1574 = vpop.permute.xlu0 %1573
        %v1575 = vsel %vm449, %v1570, %v1572
        %v1576 = vsel %vm449, %v1572, %v1574
        %v1580 = vadd.f32 %v1467, %v1575
        %v1581 = vadd.f32 %v1468, %v1576
        %v1582 = vadd.f32 %v1469, %v1574
        %s1583 = sld [smem:[#allocation2 + $0x4e]]
        %v1584 = vstv %s1583
        %v1585 = vmul.f32 %v1584, %v1494
        %v1586 = vmul.f32 %v1584, %v1495
        %v1587 = vmul.f32 %v1584, %v1496
        %1591 = vrot.lane.b32.xlu0 %v1585, 127
        %v1592 = vpop.permute.xlu0 %1591
        %1593 = vrot.lane.b32.xlu0 %v1586, 127
        %v1594 = vpop.permute.xlu0 %1593
        %1595 = vrot.lane.b32.xlu0 %v1587, 127
        %v1596 = vpop.permute.xlu0 %1595
        %v1597 = vsel %vm449, %v1592, %v1594
        %v1598 = vsel %vm449, %v1594, %v1596
        %v1602 = vadd.f32 %v1475, %v1597
        %v1603 = vadd.f32 %v1476, %v1598
        %v1604 = vadd.f32 %v1477, %v1596
        %s1605 = sld [smem:[#allocation2 + $0x55]]
        %v1606 = vstv %s1605
        %v1607 = vmul.f32 %v1606, %v1494
        %v1608 = vmul.f32 %v1606, %v1495
        %v1609 = vmul.f32 %v1606, %v1496
        %1613 = vrot.lane.b32.xlu0 %v1607, 127
        %v1614 = vpop.permute.xlu0 %1613
        %1615 = vrot.lane.b32.xlu0 %v1608, 127
        %v1616 = vpop.permute.xlu0 %1615
        %1617 = vrot.lane.b32.xlu0 %v1609, 127
        %v1618 = vpop.permute.xlu0 %1617
        %v1619 = vsel %vm449, %v1614, %v1616
        %v1620 = vsel %vm449, %v1616, %v1618
        %v1624 = vadd.f32 %v1483, %v1619
        %v1625 = vadd.f32 %v1484, %v1620
        %v1626 = vadd.f32 %v1485, %v1618
        %s1627 = sld [smem:[#allocation2 + $0x5c]]
        %v1628 = vstv %s1627
        %v1629 = vmul.f32 %v1628, %v1494
        %v1630 = vmul.f32 %v1628, %v1495
        %v1631 = vmul.f32 %v1628, %v1496
        %1635 = vrot.lane.b32.xlu0 %v1629, 127
        %v1636 = vpop.permute.xlu0 %1635
        %1637 = vrot.lane.b32.xlu0 %v1630, 127
        %v1638 = vpop.permute.xlu0 %1637
        %1639 = vrot.lane.b32.xlu0 %v1631, 127
        %v1640 = vpop.permute.xlu0 %1639
        %v1641 = vsel %vm449, %v1636, %v1638
        %v1642 = vsel %vm449, %v1638, %v1640
        %v1646 = vadd.f32 %v1491, %v1641
        %v1647 = vadd.f32 %v1492, %v1642
        %v1648 = vadd.f32 %v1493, %v1640
        %v1649 = vmul.f32 %v1435, %v592
        %v1650 = vmul.f32 %v1431, %v598
        %v1651 = vmul.f32 %v1436, %v599
        %s1652 = sld [smem:[#allocation2 + $0x33]]
        %v1653 = vstv %s1652
        %v1654 = vmul.f32 %v1653, %v1649
        %v1655 = vmul.f32 %v1653, %v1650
        %v1656 = vmul.f32 %v1653, %v1651
        %1660 = vrot.lane.b32.xlu0 %v1654, 126
        %v1661 = vpop.permute.xlu0 %1660
        %1662 = vrot.lane.b32.xlu0 %v1655, 126
        %v1663 = vpop.permute.xlu0 %1662
        %1664 = vrot.lane.b32.xlu0 %v1656, 126
        %v1665 = vpop.permute.xlu0 %1664
        %v1666 = vsel %vm620, %v1661, %v1663
        %v1667 = vsel %vm620, %v1663, %v1665
        %v1670 = vadd.f32 %v1515, %v1666
        %v1671 = vadd.f32 %v1516, %v1667
        %s1672 = sld [smem:[#allocation2 + $0x3a]]
        %v1673 = vstv %s1672
        %v1674 = vmul.f32 %v1673, %v1649
        %v1675 = vmul.f32 %v1673, %v1650
        %v1676 = vmul.f32 %v1673, %v1651
        %1680 = vrot.lane.b32.xlu0 %v1674, 126
        %v1681 = vpop.permute.xlu0 %1680
        %1682 = vrot.lane.b32.xlu0 %v1675, 126
        %v1683 = vpop.permute.xlu0 %1682
        %1684 = vrot.lane.b32.xlu0 %v1676, 126
        %v1685 = vpop.permute.xlu0 %1684
        %v1686 = vsel %vm620, %v1681, %v1683
        %v1687 = vsel %vm620, %v1683, %v1685
        %v1691 = vadd.f32 %v1536, %v1686
        %v1692 = vadd.f32 %v1537, %v1687
        %v1693 = vadd.f32 %v1538, %v1685
        %s1694 = sld [smem:[#allocation2 + $0x41]]
        %v1695 = vstv %s1694
        %v1696 = vmul.f32 %v1695, %v1649
        %v1697 = vmul.f32 %v1695, %v1650
        %v1698 = vmul.f32 %v1695, %v1651
        %1702 = vrot.lane.b32.xlu0 %v1696, 126
        %v1703 = vpop.permute.xlu0 %1702
        %1704 = vrot.lane.b32.xlu0 %v1697, 126
        %v1705 = vpop.permute.xlu0 %1704
        %1706 = vrot.lane.b32.xlu0 %v1698, 126
        %v1707 = vpop.permute.xlu0 %1706
        %v1708 = vsel %vm620, %v1703, %v1705
        %v1709 = vsel %vm620, %v1705, %v1707
        %v1713 = vadd.f32 %v1558, %v1708
        %v1714 = vadd.f32 %v1559, %v1709
        %v1715 = vadd.f32 %v1560, %v1707
        %s1716 = sld [smem:[#allocation2 + $0x48]]
        %v1717 = vstv %s1716
        %v1718 = vmul.f32 %v1717, %v1649
        %v1719 = vmul.f32 %v1717, %v1650
        %v1720 = vmul.f32 %v1717, %v1651
        %1724 = vrot.lane.b32.xlu0 %v1718, 126
        %v1725 = vpop.permute.xlu0 %1724
        %1726 = vrot.lane.b32.xlu0 %v1719, 126
        %v1727 = vpop.permute.xlu0 %1726
        %1728 = vrot.lane.b32.xlu0 %v1720, 126
        %v1729 = vpop.permute.xlu0 %1728
        %v1730 = vsel %vm620, %v1725, %v1727
        %v1731 = vsel %vm620, %v1727, %v1729
        %v1735 = vadd.f32 %v1580, %v1730
        %v1736 = vadd.f32 %v1581, %v1731
        %v1737 = vadd.f32 %v1582, %v1729
        %s1738 = sld [smem:[#allocation2 + $0x4f]]
        %v1739 = vstv %s1738
        %v1740 = vmul.f32 %v1739, %v1649
        %v1741 = vmul.f32 %v1739, %v1650
        %v1742 = vmul.f32 %v1739, %v1651
        %1746 = vrot.lane.b32.xlu0 %v1740, 126
        %v1747 = vpop.permute.xlu0 %1746
        %1748 = vrot.lane.b32.xlu0 %v1741, 126
        %v1749 = vpop.permute.xlu0 %1748
        %1750 = vrot.lane.b32.xlu0 %v1742, 126
        %v1751 = vpop.permute.xlu0 %1750
        %v1752 = vsel %vm620, %v1747, %v1749
        %v1753 = vsel %vm620, %v1749, %v1751
        %v1757 = vadd.f32 %v1602, %v1752
        %v1758 = vadd.f32 %v1603, %v1753
        %v1759 = vadd.f32 %v1604, %v1751
        %s1760 = sld [smem:[#allocation2 + $0x56]]
        %v1761 = vstv %s1760
        %v1762 = vmul.f32 %v1761, %v1649
        %v1763 = vmul.f32 %v1761, %v1650
        %v1764 = vmul.f32 %v1761, %v1651
        %1768 = vrot.lane.b32.xlu0 %v1762, 126
        %v1769 = vpop.permute.xlu0 %1768
        %1770 = vrot.lane.b32.xlu0 %v1763, 126
        %v1771 = vpop.permute.xlu0 %1770
        %1772 = vrot.lane.b32.xlu0 %v1764, 126
        %v1773 = vpop.permute.xlu0 %1772
        %v1774 = vsel %vm620, %v1769, %v1771
        %v1775 = vsel %vm620, %v1771, %v1773
        %v1779 = vadd.f32 %v1624, %v1774
        %v1780 = vadd.f32 %v1625, %v1775
        %v1781 = vadd.f32 %v1626, %v1773
        %s1782 = sld [smem:[#allocation2 + $0x5d]]
        %v1783 = vstv %s1782
        %v1784 = vmul.f32 %v1783, %v1649
        %v1785 = vmul.f32 %v1783, %v1650
        %v1786 = vmul.f32 %v1783, %v1651
        %1790 = vrot.lane.b32.xlu0 %v1784, 126
        %v1791 = vpop.permute.xlu0 %1790
        %1792 = vrot.lane.b32.xlu0 %v1785, 126
        %v1793 = vpop.permute.xlu0 %1792
        %1794 = vrot.lane.b32.xlu0 %v1786, 126
        %v1795 = vpop.permute.xlu0 %1794
        %v1796 = vsel %vm620, %v1791, %v1793
        %v1797 = vsel %vm620, %v1793, %v1795
        %v1801 = vadd.f32 %v1646, %v1796
        %v1802 = vadd.f32 %v1647, %v1797
        %v1803 = vadd.f32 %v1648, %v1795
        %s1804 = sld [smem:[#allocation2 + $0x34]]
        %v1805 = vstv %s1804
        %v1806 = vmul.f32 %v1805, %v1435
        %v1807 = vmul.f32 %v1805, %v1431
        %v1808 = vmul.f32 %v1805, %v1436
        %1812 = vrot.lane.b32.xlu0 %v1806, 125
        %v1813 = vpop.permute.xlu0 %1812
        %1814 = vrot.lane.b32.xlu0 %v1807, 125
        %v1815 = vpop.permute.xlu0 %1814
        %1816 = vrot.lane.b32.xlu0 %v1808, 125
        %v1817 = vpop.permute.xlu0 %1816
        %v1818 = vsel %vm773, %v1813, %v1815
        %v1819 = vsel %vm773, %v1815, %v1817
        %v1822 = vadd.f32 %v1670, %v1818
        %v1823 = vadd.f32 %v1671, %v1819
        %s1824 = sld [smem:[#allocation2 + $0x3b]]
        %v1825 = vstv %s1824
        %v1826 = vmul.f32 %v1825, %v1435
        %v1827 = vmul.f32 %v1825, %v1431
        %v1828 = vmul.f32 %v1825, %v1436
        %1832 = vrot.lane.b32.xlu0 %v1826, 125
        %v1833 = vpop.permute.xlu0 %1832
        %1834 = vrot.lane.b32.xlu0 %v1827, 125
        %v1835 = vpop.permute.xlu0 %1834
        %1836 = vrot.lane.b32.xlu0 %v1828, 125
        %v1837 = vpop.permute.xlu0 %1836
        %v1838 = vsel %vm773, %v1833, %v1835
        %v1839 = vsel %vm773, %v1835, %v1837
        %v1843 = vadd.f32 %v1691, %v1838
        %v1844 = vadd.f32 %v1692, %v1839
        %v1845 = vadd.f32 %v1693, %v1837
        %s1846 = sld [smem:[#allocation2 + $0x42]]
        %v1847 = vstv %s1846
        %v1848 = vmul.f32 %v1847, %v1435
        %v1849 = vmul.f32 %v1847, %v1431
        %v1850 = vmul.f32 %v1847, %v1436
        %1854 = vrot.lane.b32.xlu0 %v1848, 125
        %v1855 = vpop.permute.xlu0 %1854
        %1856 = vrot.lane.b32.xlu0 %v1849, 125
        %v1857 = vpop.permute.xlu0 %1856
        %1858 = vrot.lane.b32.xlu0 %v1850, 125
        %v1859 = vpop.permute.xlu0 %1858
        %v1860 = vsel %vm773, %v1855, %v1857
        %v1861 = vsel %vm773, %v1857, %v1859
        %v1865 = vadd.f32 %v1713, %v1860
        %v1866 = vadd.f32 %v1714, %v1861
        %v1867 = vadd.f32 %v1715, %v1859
        %s1868 = sld [smem:[#allocation2 + $0x49]]
        %v1869 = vstv %s1868
        %v1870 = vmul.f32 %v1869, %v1435
        %v1871 = vmul.f32 %v1869, %v1431
        %v1872 = vmul.f32 %v1869, %v1436
        %1876 = vrot.lane.b32.xlu0 %v1870, 125
        %v1877 = vpop.permute.xlu0 %1876
        %1878 = vrot.lane.b32.xlu0 %v1871, 125
        %v1879 = vpop.permute.xlu0 %1878
        %1880 = vrot.lane.b32.xlu0 %v1872, 125
        %v1881 = vpop.permute.xlu0 %1880
        %v1882 = vsel %vm773, %v1877, %v1879
        %v1883 = vsel %vm773, %v1879, %v1881
        %v1887 = vadd.f32 %v1735, %v1882
        %v1888 = vadd.f32 %v1736, %v1883
        %v1889 = vadd.f32 %v1737, %v1881
        %s1890 = sld [smem:[#allocation2 + $0x50]]
        %v1891 = vstv %s1890
        %v1892 = vmul.f32 %v1891, %v1435
        %v1893 = vmul.f32 %v1891, %v1431
        %v1894 = vmul.f32 %v1891, %v1436
        %1898 = vrot.lane.b32.xlu0 %v1892, 125
        %v1899 = vpop.permute.xlu0 %1898
        %1900 = vrot.lane.b32.xlu0 %v1893, 125
        %v1901 = vpop.permute.xlu0 %1900
        %1902 = vrot.lane.b32.xlu0 %v1894, 125
        %v1903 = vpop.permute.xlu0 %1902
        %v1904 = vsel %vm773, %v1899, %v1901
        %v1905 = vsel %vm773, %v1901, %v1903
        %v1909 = vadd.f32 %v1757, %v1904
        %v1910 = vadd.f32 %v1758, %v1905
        %v1911 = vadd.f32 %v1759, %v1903
        %s1912 = sld [smem:[#allocation2 + $0x57]]
        %v1913 = vstv %s1912
        %v1914 = vmul.f32 %v1913, %v1435
        %v1915 = vmul.f32 %v1913, %v1431
        %v1916 = vmul.f32 %v1913, %v1436
        %1920 = vrot.lane.b32.xlu0 %v1914, 125
        %v1921 = vpop.permute.xlu0 %1920
        %1922 = vrot.lane.b32.xlu0 %v1915, 125
        %v1923 = vpop.permute.xlu0 %1922
        %1924 = vrot.lane.b32.xlu0 %v1916, 125
        %v1925 = vpop.permute.xlu0 %1924
        %v1926 = vsel %vm773, %v1921, %v1923
        %v1927 = vsel %vm773, %v1923, %v1925
        %v1931 = vadd.f32 %v1779, %v1926
        %v1932 = vadd.f32 %v1780, %v1927
        %v1933 = vadd.f32 %v1781, %v1925
        %s1934 = sld [smem:[#allocation2 + $0x5e]]
        %v1935 = vstv %s1934
        %v1936 = vmul.f32 %v1935, %v1435
        %v1937 = vmul.f32 %v1935, %v1431
        %v1938 = vmul.f32 %v1935, %v1436
        %1942 = vrot.lane.b32.xlu0 %v1936, 125
        %v1943 = vpop.permute.xlu0 %1942
        %1944 = vrot.lane.b32.xlu0 %v1937, 125
        %v1945 = vpop.permute.xlu0 %1944
        %1946 = vrot.lane.b32.xlu0 %v1938, 125
        %v1947 = vpop.permute.xlu0 %1946
        %v1948 = vsel %vm773, %v1943, %v1945
        %v1949 = vsel %vm773, %v1945, %v1947
        %v1953 = vadd.f32 %v1801, %v1948
        %v1954 = vadd.f32 %v1802, %v1949
        %v1955 = vadd.f32 %v1803, %v1947
        %v1956 = vmul.f32 %v1435, %v916
        %v1957 = vmul.f32 %v1431, %v922
        %v1958 = vmul.f32 %v1436, %v923
        %s1959 = sld [smem:[#allocation2 + $0x35]]
        %v1960 = vstv %s1959
        %v1961 = vmul.f32 %v1960, %v1956
        %v1962 = vmul.f32 %v1960, %v1957
        %v1963 = vmul.f32 %v1960, %v1958
        %1967 = vrot.lane.b32.xlu0 %v1961, 124
        %v1968 = vpop.permute.xlu0 %1967
        %1969 = vrot.lane.b32.xlu0 %v1962, 124
        %v1970 = vpop.permute.xlu0 %1969
        %1971 = vrot.lane.b32.xlu0 %v1963, 124
        %v1972 = vpop.permute.xlu0 %1971
        %v1973 = vsel %vm944, %v1968, %v1970
        %v1974 = vsel %vm944, %v1970, %v1972
        %v1977 = vadd.f32 %v1822, %v1973
        %v1978 = vadd.f32 %v1823, %v1974
        %s1979 = sld [smem:[#allocation2 + $0x3c]]
        %v1980 = vstv %s1979
        %v1981 = vmul.f32 %v1980, %v1956
        %v1982 = vmul.f32 %v1980, %v1957
        %v1983 = vmul.f32 %v1980, %v1958
        %1987 = vrot.lane.b32.xlu0 %v1981, 124
        %v1988 = vpop.permute.xlu0 %1987
        %1989 = vrot.lane.b32.xlu0 %v1982, 124
        %v1990 = vpop.permute.xlu0 %1989
        %1991 = vrot.lane.b32.xlu0 %v1983, 124
        %v1992 = vpop.permute.xlu0 %1991
        %v1993 = vsel %vm944, %v1988, %v1990
        %v1994 = vsel %vm944, %v1990, %v1992
        %v1998 = vadd.f32 %v1843, %v1993
        %v1999 = vadd.f32 %v1844, %v1994
        %v2000 = vadd.f32 %v1845, %v1992
        %s2001 = sld [smem:[#allocation2 + $0x43]]
        %v2002 = vstv %s2001
        %v2003 = vmul.f32 %v2002, %v1956
        %v2004 = vmul.f32 %v2002, %v1957
        %v2005 = vmul.f32 %v2002, %v1958
        %2009 = vrot.lane.b32.xlu0 %v2003, 124
        %v2010 = vpop.permute.xlu0 %2009
        %2011 = vrot.lane.b32.xlu0 %v2004, 124
        %v2012 = vpop.permute.xlu0 %2011
        %2013 = vrot.lane.b32.xlu0 %v2005, 124
        %v2014 = vpop.permute.xlu0 %2013
        %v2015 = vsel %vm944, %v2010, %v2012
        %v2016 = vsel %vm944, %v2012, %v2014
        %v2020 = vadd.f32 %v1865, %v2015
        %v2021 = vadd.f32 %v1866, %v2016
        %v2022 = vadd.f32 %v1867, %v2014
        %s2023 = sld [smem:[#allocation2 + $0x4a]]
        %v2024 = vstv %s2023
        %v2025 = vmul.f32 %v2024, %v1956
        %v2026 = vmul.f32 %v2024, %v1957
        %v2027 = vmul.f32 %v2024, %v1958
        %2031 = vrot.lane.b32.xlu0 %v2025, 124
        %v2032 = vpop.permute.xlu0 %2031
        %2033 = vrot.lane.b32.xlu0 %v2026, 124
        %v2034 = vpop.permute.xlu0 %2033
        %2035 = vrot.lane.b32.xlu0 %v2027, 124
        %v2036 = vpop.permute.xlu0 %2035
        %v2037 = vsel %vm944, %v2032, %v2034
        %v2038 = vsel %vm944, %v2034, %v2036
        %v2042 = vadd.f32 %v1887, %v2037
        %v2043 = vadd.f32 %v1888, %v2038
        %v2044 = vadd.f32 %v1889, %v2036
        %s2045 = sld [smem:[#allocation2 + $0x51]]
        %v2046 = vstv %s2045
        %v2047 = vmul.f32 %v2046, %v1956
        %v2048 = vmul.f32 %v2046, %v1957
        %v2049 = vmul.f32 %v2046, %v1958
        %2053 = vrot.lane.b32.xlu0 %v2047, 124
        %v2054 = vpop.permute.xlu0 %2053
        %2055 = vrot.lane.b32.xlu0 %v2048, 124
        %v2056 = vpop.permute.xlu0 %2055
        %2057 = vrot.lane.b32.xlu0 %v2049, 124
        %v2058 = vpop.permute.xlu0 %2057
        %v2059 = vsel %vm944, %v2054, %v2056
        %v2060 = vsel %vm944, %v2056, %v2058
        %v2064 = vadd.f32 %v1909, %v2059
        %v2065 = vadd.f32 %v1910, %v2060
        %v2066 = vadd.f32 %v1911, %v2058
        %s2067 = sld [smem:[#allocation2 + $0x58]]
        %v2068 = vstv %s2067
        %v2069 = vmul.f32 %v2068, %v1956
        %v2070 = vmul.f32 %v2068, %v1957
        %v2071 = vmul.f32 %v2068, %v1958
        %2075 = vrot.lane.b32.xlu0 %v2069, 124
        %v2076 = vpop.permute.xlu0 %2075
        %2077 = vrot.lane.b32.xlu0 %v2070, 124
        %v2078 = vpop.permute.xlu0 %2077
        %2079 = vrot.lane.b32.xlu0 %v2071, 124
        %v2080 = vpop.permute.xlu0 %2079
        %v2081 = vsel %vm944, %v2076, %v2078
        %v2082 = vsel %vm944, %v2078, %v2080
        %v2086 = vadd.f32 %v1931, %v2081
        %v2087 = vadd.f32 %v1932, %v2082
        %v2088 = vadd.f32 %v1933, %v2080
        %s2089 = sld [smem:[#allocation2 + $0x5f]]
        %v2090 = vstv %s2089
        %v2091 = vmul.f32 %v2090, %v1956
        %v2092 = vmul.f32 %v2090, %v1957
        %v2093 = vmul.f32 %v2090, %v1958
        %2097 = vrot.lane.b32.xlu0 %v2091, 124
        %v2098 = vpop.permute.xlu0 %2097
        %2099 = vrot.lane.b32.xlu0 %v2092, 124
        %v2100 = vpop.permute.xlu0 %2099
        %2101 = vrot.lane.b32.xlu0 %v2093, 124
        %v2102 = vpop.permute.xlu0 %2101
        %v2103 = vsel %vm944, %v2098, %v2100
        %v2104 = vsel %vm944, %v2100, %v2102
        %v2108 = vadd.f32 %v1953, %v2103
        %v2109 = vadd.f32 %v1954, %v2104
        %v2110 = vadd.f32 %v1955, %v2102
        %v2111 = vmul.f32 %v1435, %v1087
        %v2112 = vmul.f32 %v1431, %v1093
        %v2113 = vmul.f32 %v1436, %v1094
        %s2114 = sld [smem:[#allocation2 + $0x36]]
        %v2115 = vstv %s2114
        %v2116 = vmul.f32 %v2115, %v2111
        %v2117 = vmul.f32 %v2115, %v2112
        %v2118 = vmul.f32 %v2115, %v2113
        %2122 = vrot.lane.b32.xlu0 %v2116, 123
        %v2123 = vpop.permute.xlu0 %2122
        %2124 = vrot.lane.b32.xlu0 %v2117, 123
        %v2125 = vpop.permute.xlu0 %2124
        %2126 = vrot.lane.b32.xlu0 %v2118, 123
        %v2127 = vpop.permute.xlu0 %2126
        %v2128 = vsel %vm1115, %v2123, %v2125
        %v2129 = vsel %vm1115, %v2125, %v2127
        %v2132 = vadd.f32 %v1977, %v2128
        %v2133 = vadd.f32 %v1978, %v2129
        %s2134 = sld [smem:[#allocation2 + $0x3d]]
        %v2135 = vstv %s2134
        %v2136 = vmul.f32 %v2135, %v2111
        %v2137 = vmul.f32 %v2135, %v2112
        %v2138 = vmul.f32 %v2135, %v2113
        %2142 = vrot.lane.b32.xlu0 %v2136, 123
        %v2143 = vpop.permute.xlu0 %2142
        %2144 = vrot.lane.b32.xlu0 %v2137, 123
        %v2145 = vpop.permute.xlu0 %2144
        %2146 = vrot.lane.b32.xlu0 %v2138, 123
        %v2147 = vpop.permute.xlu0 %2146
        %v2148 = vsel %vm1115, %v2143, %v2145
        %v2149 = vsel %vm1115, %v2145, %v2147
        %v2153 = vadd.f32 %v1998, %v2148
        %v2154 = vadd.f32 %v1999, %v2149
        %v2155 = vadd.f32 %v2000, %v2147
        %s2156 = sld [smem:[#allocation2 + $0x44]]
        %v2157 = vstv %s2156
        %v2158 = vmul.f32 %v2157, %v2111
        %v2159 = vmul.f32 %v2157, %v2112
        %v2160 = vmul.f32 %v2157, %v2113
        %2164 = vrot.lane.b32.xlu0 %v2158, 123
        %v2165 = vpop.permute.xlu0 %2164
        %2166 = vrot.lane.b32.xlu0 %v2159, 123
        %v2167 = vpop.permute.xlu0 %2166
        %2168 = vrot.lane.b32.xlu0 %v2160, 123
        %v2169 = vpop.permute.xlu0 %2168
        %v2170 = vsel %vm1115, %v2165, %v2167
        %v2171 = vsel %vm1115, %v2167, %v2169
        %v2175 = vadd.f32 %v2020, %v2170
        %v2176 = vadd.f32 %v2021, %v2171
        %v2177 = vadd.f32 %v2022, %v2169
        %s2178 = sld [smem:[#allocation2 + $0x4b]]
        %v2179 = vstv %s2178
        %v2180 = vmul.f32 %v2179, %v2111
        %v2181 = vmul.f32 %v2179, %v2112
        %v2182 = vmul.f32 %v2179, %v2113
        %2186 = vrot.lane.b32.xlu0 %v2180, 123
        %v2187 = vpop.permute.xlu0 %2186
        %2188 = vrot.lane.b32.xlu0 %v2181, 123
        %v2189 = vpop.permute.xlu0 %2188
        %2190 = vrot.lane.b32.xlu0 %v2182, 123
        %v2191 = vpop.permute.xlu0 %2190
        %v2192 = vsel %vm1115, %v2187, %v2189
        %v2193 = vsel %vm1115, %v2189, %v2191
        %v2197 = vadd.f32 %v2042, %v2192
        %v2198 = vadd.f32 %v2043, %v2193
        %v2199 = vadd.f32 %v2044, %v2191
        %s2200 = sld [smem:[#allocation2 + $0x52]]
        %v2201 = vstv %s2200
        %v2202 = vmul.f32 %v2201, %v2111
        %v2203 = vmul.f32 %v2201, %v2112
        %v2204 = vmul.f32 %v2201, %v2113
        %2208 = vrot.lane.b32.xlu0 %v2202, 123
        %v2209 = vpop.permute.xlu0 %2208
        %2210 = vrot.lane.b32.xlu0 %v2203, 123
        %v2211 = vpop.permute.xlu0 %2210
        %2212 = vrot.lane.b32.xlu0 %v2204, 123
        %v2213 = vpop.permute.xlu0 %2212
        %v2214 = vsel %vm1115, %v2209, %v2211
        %v2215 = vsel %vm1115, %v2211, %v2213
        %v2219 = vadd.f32 %v2064, %v2214
        %v2220 = vadd.f32 %v2065, %v2215
        %v2221 = vadd.f32 %v2066, %v2213
        %s2222 = sld [smem:[#allocation2 + $0x59]]
        %v2223 = vstv %s2222
        %v2224 = vmul.f32 %v2223, %v2111
        %v2225 = vmul.f32 %v2223, %v2112
        %v2226 = vmul.f32 %v2223, %v2113
        %2230 = vrot.lane.b32.xlu0 %v2224, 123
        %v2231 = vpop.permute.xlu0 %2230
        %2232 = vrot.lane.b32.xlu0 %v2225, 123
        %v2233 = vpop.permute.xlu0 %2232
        %2234 = vrot.lane.b32.xlu0 %v2226, 123
        %v2235 = vpop.permute.xlu0 %2234
        %v2236 = vsel %vm1115, %v2231, %v2233
        %v2237 = vsel %vm1115, %v2233, %v2235
        %v2241 = vadd.f32 %v2086, %v2236
        %v2242 = vadd.f32 %v2087, %v2237
        %v2243 = vadd.f32 %v2088, %v2235
        %s2244 = sld [smem:[#allocation2 + $0x60]]
        %v2245 = vstv %s2244
        %v2246 = vmul.f32 %v2245, %v2111
        %v2247 = vmul.f32 %v2245, %v2112
        %v2248 = vmul.f32 %v2245, %v2113
        %2252 = vrot.lane.b32.xlu0 %v2246, 123
        %v2253 = vpop.permute.xlu0 %2252
        %2254 = vrot.lane.b32.xlu0 %v2247, 123
        %v2255 = vpop.permute.xlu0 %2254
        %2256 = vrot.lane.b32.xlu0 %v2248, 123
        %v2257 = vpop.permute.xlu0 %2256
        %v2258 = vsel %vm1115, %v2253, %v2255
        %v2259 = vsel %vm1115, %v2255, %v2257
        %v2263 = vadd.f32 %v2108, %v2258
        %v2264 = vadd.f32 %v2109, %v2259
        %v2265 = vadd.f32 %v2110, %v2257
        %v2266 = vmul.f32 %v1435, %v1258
        %v2267 = vmul.f32 %v1431, %v1264
        %v2268 = vmul.f32 %v1436, %v1265
        %s2269 = sld [smem:[#allocation2 + $0x37]]
        %v2270 = vstv %s2269
        %v2271 = vmul.f32 %v2270, %v2266
        %v2272 = vmul.f32 %v2270, %v2267
        %v2273 = vmul.f32 %v2270, %v2268
        %2277 = vrot.lane.b32.xlu0 %v2271, 122
        %v2278 = vpop.permute.xlu0 %2277
        %2279 = vrot.lane.b32.xlu0 %v2272, 122
        %v2280 = vpop.permute.xlu0 %2279
        %2281 = vrot.lane.b32.xlu0 %v2273, 122
        %v2282 = vpop.permute.xlu0 %2281
        %v2283 = vsel %vm1286, %v2278, %v2280
        %v2284 = vsel %vm1286, %v2280, %v2282
        %v2287 = vadd.f32 %v2132, %v2283
        %v2288 = vadd.f32 %v2133, %v2284
        %s2289 = sld [smem:[#allocation2 + $0x3e]]
        %v2290 = vstv %s2289
        %v2291 = vmul.f32 %v2290, %v2266
        %v2292 = vmul.f32 %v2290, %v2267
        %v2293 = vmul.f32 %v2290, %v2268
        %2297 = vrot.lane.b32.xlu0 %v2291, 122
        %v2298 = vpop.permute.xlu0 %2297
        %2299 = vrot.lane.b32.xlu0 %v2292, 122
        %v2300 = vpop.permute.xlu0 %2299
        %2301 = vrot.lane.b32.xlu0 %v2293, 122
        %v2302 = vpop.permute.xlu0 %2301
        %v2303 = vsel %vm1286, %v2298, %v2300
        %v2304 = vsel %vm1286, %v2300, %v2302
        %v2308 = vadd.f32 %v2153, %v2303
        %v2309 = vadd.f32 %v2154, %v2304
        %v2310 = vadd.f32 %v2155, %v2302
        %s2311 = sld [smem:[#allocation2 + $0x45]]
        %v2312 = vstv %s2311
        %v2313 = vmul.f32 %v2312, %v2266
        %v2314 = vmul.f32 %v2312, %v2267
        %v2315 = vmul.f32 %v2312, %v2268
        %2319 = vrot.lane.b32.xlu0 %v2313, 122
        %v2320 = vpop.permute.xlu0 %2319
        %2321 = vrot.lane.b32.xlu0 %v2314, 122
        %v2322 = vpop.permute.xlu0 %2321
        %2323 = vrot.lane.b32.xlu0 %v2315, 122
        %v2324 = vpop.permute.xlu0 %2323
        %v2325 = vsel %vm1286, %v2320, %v2322
        %v2326 = vsel %vm1286, %v2322, %v2324
        %v2330 = vadd.f32 %v2175, %v2325
        %v2331 = vadd.f32 %v2176, %v2326
        %v2332 = vadd.f32 %v2177, %v2324
        %s2333 = sld [smem:[#allocation2 + $0x4c]]
        %v2334 = vstv %s2333
        %v2335 = vmul.f32 %v2334, %v2266
        %v2336 = vmul.f32 %v2334, %v2267
        %v2337 = vmul.f32 %v2334, %v2268
        %2341 = vrot.lane.b32.xlu0 %v2335, 122
        %v2342 = vpop.permute.xlu0 %2341
        %2343 = vrot.lane.b32.xlu0 %v2336, 122
        %v2344 = vpop.permute.xlu0 %2343
        %2345 = vrot.lane.b32.xlu0 %v2337, 122
        %v2346 = vpop.permute.xlu0 %2345
        %v2347 = vsel %vm1286, %v2342, %v2344
        %v2348 = vsel %vm1286, %v2344, %v2346
        %v2352 = vadd.f32 %v2197, %v2347
        %v2353 = vadd.f32 %v2198, %v2348
        %v2354 = vadd.f32 %v2199, %v2346
        %s2355 = sld [smem:[#allocation2 + $0x53]]
        %v2356 = vstv %s2355
        %v2357 = vmul.f32 %v2356, %v2266
        %v2358 = vmul.f32 %v2356, %v2267
        %v2359 = vmul.f32 %v2356, %v2268
        %2363 = vrot.lane.b32.xlu0 %v2357, 122
        %v2364 = vpop.permute.xlu0 %2363
        %2365 = vrot.lane.b32.xlu0 %v2358, 122
        %v2366 = vpop.permute.xlu0 %2365
        %2367 = vrot.lane.b32.xlu0 %v2359, 122
        %v2368 = vpop.permute.xlu0 %2367
        %v2369 = vsel %vm1286, %v2364, %v2366
        %v2370 = vsel %vm1286, %v2366, %v2368
        %v2374 = vadd.f32 %v2219, %v2369
        %v2375 = vadd.f32 %v2220, %v2370
        %v2376 = vadd.f32 %v2221, %v2368
        %s2377 = sld [smem:[#allocation2 + $0x5a]]
        %v2378 = vstv %s2377
        %v2379 = vmul.f32 %v2378, %v2266
        %v2380 = vmul.f32 %v2378, %v2267
        %v2381 = vmul.f32 %v2378, %v2268
        %2385 = vrot.lane.b32.xlu0 %v2379, 122
        %v2386 = vpop.permute.xlu0 %2385
        %2387 = vrot.lane.b32.xlu0 %v2380, 122
        %v2388 = vpop.permute.xlu0 %2387
        %2389 = vrot.lane.b32.xlu0 %v2381, 122
        %v2390 = vpop.permute.xlu0 %2389
        %v2391 = vsel %vm1286, %v2386, %v2388
        %v2392 = vsel %vm1286, %v2388, %v2390
        %v2396 = vadd.f32 %v2241, %v2391
        %v2397 = vadd.f32 %v2242, %v2392
        %v2398 = vadd.f32 %v2243, %v2390
        %s2399 = sld [smem:[#allocation2 + $0x61]]
        %v2400 = vstv %s2399
        %v2401 = vmul.f32 %v2400, %v2266
        %v2402 = vmul.f32 %v2400, %v2267
        %v2403 = vmul.f32 %v2400, %v2268
        %2407 = vrot.lane.b32.xlu0 %v2401, 122
        %v2408 = vpop.permute.xlu0 %2407
        %2409 = vrot.lane.b32.xlu0 %v2402, 122
        %v2410 = vpop.permute.xlu0 %2409
        %2411 = vrot.lane.b32.xlu0 %v2403, 122
        %v2412 = vpop.permute.xlu0 %2411
        %v2413 = vsel %vm1286, %v2408, %v2410
        %v2414 = vsel %vm1286, %v2410, %v2412
        %v2418 = vadd.f32 %v2263, %v2413
        %v2419 = vadd.f32 %v2264, %v2414
        %v2420 = vadd.f32 %v2265, %v2412
        %v2421 = vadd.f32 %v2287, 0.0
        %v2422 = vadd.f32 %v2288, 0.0
        %2426 = vrot.lane.b32.xlu0 %v2308, 112
        %v2427 = vpop.permute.xlu0 %2426
        %2428 = vrot.lane.b32.xlu0 %v2309, 112
        %v2429 = vpop.permute.xlu0 %2428
        %2430 = vrot.lane.b32.xlu0 %v2310, 112
        %v2431 = vpop.permute.xlu0 %2430
        %vm2432 = vcmask 916480
        %v2433 = vsel %vm2432, %v2427, %v2429
        %v2434 = vsel %vm2432, %v2429, %v2431
        %v2437 = vadd.f32 %v2421, %v2433
        %v2438 = vadd.f32 %v2422, %v2434
        %2442 = vrot.lane.b32.xlu0 %v2330, 96
        %v2443 = vpop.permute.xlu0 %2442
        %2444 = vrot.lane.b32.xlu0 %v2331, 96
        %v2445 = vpop.permute.xlu0 %2444
        %2446 = vrot.lane.b32.xlu0 %v2332, 96
        %v2447 = vpop.permute.xlu0 %2446
        %vm2448 = vcmask 785408
        %v2449 = vsel %vm2448, %v2443, %v2445
        %v2450 = vsel %vm2448, %v2445, %v2447
        %v2453 = vadd.f32 %v2437, %v2449
        %v2454 = vadd.f32 %v2438, %v2450
        %2458 = vrot.lane.b32.xlu0 %v2352, 80
        %v2459 = vpop.permute.xlu0 %2458
        %2460 = vrot.lane.b32.xlu0 %v2353, 80
        %v2461 = vpop.permute.xlu0 %2460
        %2462 = vrot.lane.b32.xlu0 %v2354, 80
        %v2463 = vpop.permute.xlu0 %2462
        %vm2464 = vcmask 654336
        %v2465 = vsel %vm2464, %v2459, %v2461
        %v2466 = vsel %vm2464, %v2461, %v2463
        %v2469 = vadd.f32 %v2453, %v2465
        %v2470 = vadd.f32 %v2454, %v2466
        %2474 = vrot.lane.b32.xlu0 %v2374, 64
        %v2475 = vpop.permute.xlu0 %2474
        %2476 = vrot.lane.b32.xlu0 %v2375, 64
        %v2477 = vpop.permute.xlu0 %2476
        %2478 = vrot.lane.b32.xlu0 %v2376, 64
        %v2479 = vpop.permute.xlu0 %2478
        %vm2480 = vcmask 523264
        %v2481 = vsel %vm2480, %v2475, %v2477
        %v2482 = vsel %vm2480, %v2477, %v2479
        %v2485 = vadd.f32 %v2469, %v2481
        %v2486 = vadd.f32 %v2470, %v2482
        %2490 = vrot.lane.b32.xlu0 %v2396, 48
        %v2491 = vpop.permute.xlu0 %2490
        %2492 = vrot.lane.b32.xlu0 %v2397, 48
        %v2493 = vpop.permute.xlu0 %2492
        %2494 = vrot.lane.b32.xlu0 %v2398, 48
        %v2495 = vpop.permute.xlu0 %2494
        %vm2496 = vcmask 392192
        %v2497 = vsel %vm2496, %v2491, %v2493
        %v2498 = vsel %vm2496, %v2493, %v2495
        %v2501 = vadd.f32 %v2485, %v2497
        %v2502 = vadd.f32 %v2486, %v2498
        %2506 = vrot.lane.b32.xlu0 %v2418, 32
        %v2507 = vpop.permute.xlu0 %2506
        %2508 = vrot.lane.b32.xlu0 %v2419, 32
        %v2509 = vpop.permute.xlu0 %2508
        %2510 = vrot.lane.b32.xlu0 %v2420, 32
        %v2511 = vpop.permute.xlu0 %2510
        %vm2512 = vcmask 261120
        %v2513 = vsel %vm2512, %v2507, %v2509
        %v2514 = vsel %vm2512, %v2509, %v2511
        %v2517 = vadd.f32 %v2501, %v2513
        %v2518 = vadd.f32 %v2502, %v2514
        %s2519 = sld [smem:[#allocation2 + $0x62]]
        %v2520 = vstv %s2519
        %v2521 = vadd.f32 %v2517, %v2520
        %v2522 = vadd.f32 %v2518, %v2520
        %v2523 = vsub.f32 0.0, %v2521
        %v2524 = vsub.f32 0.0, %v2522
        %v2525 = vmul.f32 %v2523, 1.442695
        %v2526 = vpow.pop %v2525
        %v2527 = vmul.f32 %v2524, 1.442695
        %v2528 = vpow.pop %v2527
        %v2529 = vadd.f32 %v2526, 1.0
        %v2530 = vadd.f32 %v2528, 1.0
        %v2531 = vrcp.pop %v2529
        %v2532 = vmul.f32 %v2529, %v2531
        %v2533 = vsub.f32 1.0, %v2532
        %v2534 = vmul.f32 %v2531, %v2533
        %v2535 = vadd.f32 %v2531, %v2534
        %vm2536 = vweird.f32 %v2529
        %vm2537 = vweird.f32 %v2531
        %vm2538 = vmor %vm2536, %vm2537
        %v2539 = vsel %vm2538, %v2531, %v2535
        %v2540 = vand.u32 2147483647, %v2529
        %vm2541 = vcmp.eq.f32.partialorder %v2540, 8.507059e+37
        %v2542 = vand.u32 %v2529, 2147483648
        %v2543 = vor.u32 1.1754944e-38, %v2542
        %v2544 = vsel %vm2541, %v2543, %v2539
        %v2545 = vmul.f32 1.0, %v2544
        %v2546 = vrcp.pop %v2530
        %v2547 = vmul.f32 %v2530, %v2546
        %v2548 = vsub.f32 1.0, %v2547
        %v2549 = vmul.f32 %v2546, %v2548
        %v2550 = vadd.f32 %v2546, %v2549
        %vm2551 = vweird.f32 %v2530
        %vm2552 = vweird.f32 %v2546
        %vm2553 = vmor %vm2551, %vm2552
        %v2554 = vsel %vm2553, %v2546, %v2550
        %v2555 = vand.u32 2147483647, %v2530
        %vm2556 = vcmp.eq.f32.partialorder %v2555, 8.507059e+37
        %v2557 = vand.u32 %v2530, 2147483648
        %v2558 = vor.u32 1.1754944e-38, %v2557
        %v2559 = vsel %vm2556, %v2558, %v2554
        %v2560 = vmul.f32 1.0, %v2559
        %v2561 = vperm.slane %v2545, 0
        %v2562 = vperm.slane %v2560, 0
        %v2565 = vrot.slane %v2562, 4
        %v2566 = vsel %vm183, %v2561, %v2565
        %v2568 = vmul.f32 %v176, %v2566
        %2569 = vst [vmem:[%s175] sm:$0xff] %v2568
        %s2570 = sand.u32 %s75, 1
        %s2571 = scalar_lea.sflag [#allocation4], %s2570
        %s2572 = sand.u32 %s75, 1
        %s2573 = smul.addr %s2572, 8
        %s2574 = scalar_lea.vmem [#allocation7], %s2573
        // Predicated region
        $region37: #{tpu_custom_call.1} parent=27 // pred_check
          %p2575 = pneg %p85
        $region38: #{tpu_custom_call.1} parent=27 // pred_check_branch
          %2577 = sbr.rel (%p2575) target = $region40
        $region39: #{tpu_custom_call.1} parent=27 // pred_region
          %2579 = vsyncadd %s2571, 0
          %s2580 = smul.addr %s20, 2
          %s2581 = smul.addr %s2580, 4
          %s2582 = scalar_lea.hbm %s2, %s2581
          %s2584 = sshll.u32 %s2574, 4
          %s2585 = int_to_ptr.vmem [resolvable:$true] %s2584
          %s2586 = sshll.u32 %s2582, 4
          %s2587 = int_to_ptr.hbm [resolvable:$true] %s2586
          %2589 = dma.vmem_to_hbm [thread:$0]  %s2585, 128, %s2587, %s2571
        $region40: #{tpu_custom_call.1} parent=27 // pred_fallthru
          _
      $region28: #{tpu_custom_call.1} parent=5 // pred_fallthru
        _
      %p2590 = scmp.le.s32.totalorder 2, %s15
      // Predicated region
      $region41: #{tpu_custom_call.1} parent=5 // pred_check
        %p2591 = pneg %p2590
      $region42: #{tpu_custom_call.1} parent=5 // pred_check_branch
        %2593 = sbr.rel (%p2591) target = $region44
      $region43: #{tpu_custom_call.1} parent=5 // pred_region
        %s2594 = ssub.s32 %s15, 2
        // Predicated region
        $region45: #{tpu_custom_call.1} parent=43 // pred_check
          %p2595 = pneg %p91
        $region46: #{tpu_custom_call.1} parent=43 // pred_check_branch
          %2597 = sbr.rel (%p2595) target = $region48
        $region47: #{tpu_custom_call.1} parent=43 // pred_region
          %s2598 = sand.u32 %s76, 1
          %s2599 = scalar_lea.sflag [#allocation4], %s2598
          %s2600 = sand.u32 %s76, 1
          %s2601 = smul.addr %s2600, 8
          %s2602 = scalar_lea.vmem [#allocation7], %s2601
          %2604 = dma.done %s2599, 128
        $region48: #{tpu_custom_call.1} parent=43 // pred_fallthru
          _
      $region44: #{tpu_custom_call.1} parent=5 // pred_fallthru
        _
    $region6: #{tpu_custom_call.1} parent=1 // loop_footer
      %s19 = sadd.s32 1, %s15
    $region7: #{tpu_custom_call.1} parent=1 // loop_footer_branch
      %14 = sbr.rel target = $region3
    $region8: #{tpu_custom_call.1} parent=1 // loop_exit
      _
    %2605 = vsyncpa [#allocation3], 1
    %s2606 = scalar_lea.sflag [#allocation3], 1
    %2607 = vsyncpa %s2606, 1
    %2608 = vsyncpa [#allocation4], 1
    %s2609 = scalar_lea.sflag [#allocation4], 1
    %2610 = vsyncpa %s2609, 1
    %2611 = vsyncpa [#allocation5], 1
    %s2612 = scalar_lea.sflag [#allocation5], 1
    %2613 = vsyncpa %s2612, 1

</llo_original>
